<compile_context>
chip_gen: v5e
topology: v5e:2x2
jax: 0.10.0
libtpu: 0.0.40
codegen_flags: <defaults>
</compile_context>

<pallas_src>
import functools

import jax
import jax.numpy as jnp
import numpy as np
from jax.experimental import pallas as pl
from jax.experimental.pallas import tpu as pltpu

EMB = 32                 # embedding_size
HID = 64                 # hidden_size_list[0]
MID = 16                 # mid_hidden
OUT_W = 2 * MID + EMB    # packed output width: [hidden | hidden_norm | x_hat] = 64


def _round_up(n, m):
    return ((n + m - 1) // m) * m


def _vae_kernel(x_ref, eps_ref, wa_ref, wb_ref, b64_ref, b32_ref,
                out_ref, kl_ref, *, rows_last, tile_b, num_tiles):
    x = x_ref[...]
    eps = eps_ref[...]

    # ---- encode: Linear(32->64) -> ReLU -> Linear(64->32) -----------------
    h = jnp.dot(x, wa_ref[:EMB, :], preferred_element_type=jnp.float32)
    h = jnp.maximum(h + b64_ref[0:1, :], 0.0)
    enc = jnp.dot(h, wb_ref[:HID, :], preferred_element_type=jnp.float32)
    enc = enc + b32_ref[0:1, :]

    # chunk along features: mu = first half, sigma = second half
    mu = enc[:, :MID]
    sigma = enc[:, MID:]

    # reparameterize-like step used in forward(); exp(sigma)**0.5 == exp(0.5*sigma)
    scale = jnp.exp(0.5 * sigma)          # single EUP pass; exp(sigma) == scale*scale
    hidden_norm = mu * scale              # emitted exactly (no wrapper reconstruction)
    hidden = eps + hidden_norm

    # ---- decode: Linear(16->64) -> ReLU -> Linear(64->32) -> ReLU ---------
    d = jnp.dot(hidden, wa_ref[EMB:, :], preferred_element_type=jnp.float32)
    d = jnp.maximum(d + b64_ref[1:2, :], 0.0)
    xh = jnp.dot(d, wb_ref[HID:, :], preferred_element_type=jnp.float32)
    x_hat = jnp.maximum(xh + b32_ref[1:2, :], 0.0)

    # ---- packed 64-lane output slab, plain slice stores --------------------
    out_ref[:, :MID] = hidden
    out_ref[:, MID:2 * MID] = hidden_norm
    out_ref[:, 2 * MID:] = x_hat

    # ---- KL partial sum for this row tile (normalized in the wrapper) ------
    kl_elem = scale * scale + mu * mu - 1.0 - sigma

    if rows_last == tile_b:               # static: batch divides evenly -> no mask ever
        kl_ref[...] = jnp.sum(kl_elem).reshape(1, 1, 1)
    else:
        is_last = pl.program_id(0) == num_tiles - 1

        @pl.when(jnp.logical_not(is_last))
        def _():
            kl_ref[...] = jnp.sum(kl_elem).reshape(1, 1, 1)

        @pl.when(is_last)
        def _():
            # mask the overhang rows of the (partial) last block
            row = jax.lax.broadcasted_iota(jnp.int32, (tile_b, 1), 0)
            kl_ref[...] = jnp.sum(
                jnp.where(row < rows_last, kl_elem, 0.0)).reshape(1, 1, 1)


def _choose_tiling(batch, max_tile_b, min_tiles):
    """tile_b = round_up(cdiv(batch, target_tiles), 8); >=2 tiles when possible."""
    target_tiles = max(min_tiles, pl.cdiv(batch, max_tile_b))
    tile_b = _round_up(pl.cdiv(batch, target_tiles), 8)
    num_tiles = pl.cdiv(batch, tile_b)
    return tile_b, num_tiles


def vae_forward(x, eps, params, *, max_tile_b=1024, min_tiles=2):
    """VAE.forward: returns (hidden, hidden_norm, x_hat, kl_div).

    params = (we0, be0, we1, be1, wd0, bd0, wd1, bd1); weights stored [in, out]
    (PyTorch weight.T); biases [1, out].
    """
    we0, be0, we1, be1, wd0, bd0, wd1, bd1 = params
    batch, emb = x.shape
    assert emb == EMB and eps.shape == (batch, MID)

    # Pack 8 parameter tensors into 4 (fewer DMA descriptors; VMEM-resident).
    w_a = jnp.concatenate([we0, wd0], axis=0)    # (EMB+MID, HID) = (48, 64)
    w_b = jnp.concatenate([we1, wd1], axis=0)    # (2*HID, EMB)   = (128, 32)
    b64 = jnp.concatenate([be0, bd0], axis=0)    # (2, HID)
    b32 = jnp.concatenate([be1, bd1], axis=0)    # (2, EMB)       (2*MID == EMB)

    tile_b, num_tiles = _choose_tiling(batch, max_tile_b, min_tiles)
    rows_last = batch - (num_tiles - 1) * tile_b     # valid rows in the last tile

    kernel = functools.partial(_vae_kernel, rows_last=rows_last,
                               tile_b=tile_b, num_tiles=num_tiles)

    flops = 2 * batch * (EMB * HID + HID * 2 * MID + MID * HID + HID * EMB)
    bytes_accessed = 4 * (batch * (EMB + MID) + batch * OUT_W
                          + w_a.size + w_b.size + b64.size + b32.size + num_tiles)

    out, kl_parts = pl.pallas_call(
        kernel,
        out_shape=(
            jax.ShapeDtypeStruct((batch, OUT_W), jnp.float32),     # [hidden|hn|x_hat]
            jax.ShapeDtypeStruct((num_tiles, 1, 1), jnp.float32),  # KL partials
        ),
        grid_spec=pltpu.PrefetchScalarGridSpec(
            num_scalar_prefetch=0,
            grid=(num_tiles,),
            in_specs=[
                pl.BlockSpec((tile_b, EMB), lambda i: (i, 0)),     # x row tile
                pl.BlockSpec((tile_b, MID), lambda i: (i, 0)),     # eps row tile
                # weights / biases: constant index_map -> resident across grid
                pl.BlockSpec((EMB + MID, HID), lambda i: (0, 0)),
                pl.BlockSpec((2 * HID, EMB), lambda i: (0, 0)),
                pl.BlockSpec((2, HID), lambda i: (0, 0)),
                pl.BlockSpec((2, EMB), lambda i: (0, 0)),
            ],
            out_specs=(
                pl.BlockSpec((tile_b, OUT_W), lambda i: (i, 0)),
                pl.BlockSpec((1, 1, 1), lambda i: (i, 0, 0)),
            ),
        ),
        compiler_params=pltpu.CompilerParams(
            dimension_semantics=("parallel",),   # v7x: grid shared by both TCs
        ),
        cost_estimate=pl.CostEstimate(
            flops=flops,
            transcendentals=batch * MID,
            bytes_accessed=bytes_accessed,
        ),
    )(x, eps, w_a, w_b, b64, b32)

    hidden = out[:, :MID]
    hidden_norm = out[:, MID:2 * MID]
    x_hat = out[:, 2 * MID:]
    kl_div = 0.5 * jnp.sum(kl_parts) / (batch * emb)
    return hidden, hidden_norm, x_hat, kl_div


def init_params(key):
    """Deterministic synthetic init. Weights stored as [in, out]."""
    def linear(k, fan_in, fan_out):
        kw, kb = jax.random.split(k)
        bound = 1.0 / jnp.sqrt(fan_in)
        w = jax.random.uniform(kw, (fan_in, fan_out), jnp.float32, -bound, bound)
        b = jax.random.uniform(kb, (1, fan_out), jnp.float32, -bound, bound)
        return w, b

    keys = jax.random.split(key, 4)
    we0, be0 = linear(keys[0], EMB, HID)          # encoder[0]: 32 -> 64
    we1, be1 = linear(keys[1], HID, 2 * MID)      # encoder[1]: 64 -> 32
    wd0, bd0 = linear(keys[2], MID, HID)          # decoder[0]: 16 -> 64
    wd1, bd1 = linear(keys[3], HID, EMB)          # decoder[1]: 64 -> 32
    return (we0, be0, we1, be1, wd0, bd0, wd1, bd1)


def vae_reference(x, eps, params):
    """Pure-JAX reference of the PyTorch module's forward()."""
    we0, be0, we1, be1, wd0, bd0, wd1, bd1 = params
    hp = jax.lax.Precision.HIGHEST
    h = jnp.maximum(jnp.dot(x, we0, precision=hp) + be0, 0.0)
    enc = jnp.dot(h, we1, precision=hp) + be1
    mu, sigma = enc[:, :MID], enc[:, MID:]
    scale = jnp.exp(0.5 * sigma)
    hidden = eps + mu * scale
    hidden_norm = mu * scale
    d = jnp.maximum(jnp.dot(hidden, wd0, precision=hp) + bd0, 0.0)
    x_hat = jnp.maximum(jnp.dot(d, wd1, precision=hp) + bd1, 0.0)
    kl = 0.5 * jnp.sum(jnp.exp(sigma) + mu * mu - 1.0 - sigma) / (x.shape[0] * x.shape[1])
    return hidden, hidden_norm, x_hat, kl


if __name__ == "__main__":
    root = jax.random.PRNGKey(0)
    k_x, k_eps, k_p = jax.random.split(root, 3)

    # Batch deliberately not a multiple of the row tile -> exercises the
    # partial last block and the last-tile KL mask (tile_b=152, 2 tiles).
    BATCH = 300
    x = jax.random.normal(k_x, (BATCH, EMB), jnp.float32)
    # TODO(synk): torch.randn_like noise is generated outside the kernel and
    # passed in deterministically (no in-kernel RNG needed for this module).
    eps = jax.random.normal(k_eps, (BATCH, MID), jnp.float32)
    params = init_params(k_p)

    hidden, hidden_norm, x_hat, kl_div = jax.block_until_ready(
        vae_forward(x, eps, params)
    )

    # Correctness check against the pure-JAX reference.
    r_hidden, r_hnorm, r_xhat, r_kl = vae_reference(x, eps, params)
    np.testing.assert_allclose(np.asarray(hidden), np.asarray(r_hidden), rtol=1e-2, atol=1e-2)
    np.testing.assert_allclose(np.asarray(hidden_norm), np.asarray(r_hnorm), rtol=1e-2, atol=1e-2)
    np.testing.assert_allclose(np.asarray(x_hat), np.asarray(r_xhat), rtol=1e-2, atol=1e-2)
    np.testing.assert_allclose(np.asarray(kl_div), np.asarray(r_kl), rtol=1e-2, atol=1e-2)

    assert hidden.shape == (BATCH, MID)
    assert hidden_norm.shape == (BATCH, MID)
    assert x_hat.shape == (BATCH, EMB)
    assert kl_div.shape == ()
    print("KERNEL_OK")
</pallas_src>

<mosaic_0001>
module attributes {stable_mosaic.version = 11 : i64} {
  func.func @_vae_kernel(%arg0: i32, %arg1: memref<152x32xf32, #tpu.memory_space<vmem>>, %arg2: memref<152x16xf32, #tpu.memory_space<vmem>>, %arg3: memref<48x64xf32, #tpu.memory_space<vmem>>, %arg4: memref<128x32xf32, #tpu.memory_space<vmem>>, %arg5: memref<2x64xf32, #tpu.memory_space<vmem>>, %arg6: memref<2x32xf32, #tpu.memory_space<vmem>>, %arg7: memref<152x64xf32, #tpu.memory_space<vmem>>, %arg8: memref<1x1x1xf32, #tpu.memory_space<vmem>>) attributes {dimension_semantics = [#tpu.dimension_semantics<parallel>], iteration_bounds = array<i64: 2>, scalar_prefetch = 0 : i64, scratch_operands = 0 : i64, tpu.core_type = #tpu.core_type<tc>, window_params = [{transform_indices = @transform_0, window_bounds = array<i64: 152, 32>}, {transform_indices = @transform_1, window_bounds = array<i64: 152, 16>}, {pipeline_mode = #tpu.pipeline_mode<synchronous>, transform_indices = @transform_2, window_bounds = array<i64: 48, 64>}, {pipeline_mode = #tpu.pipeline_mode<synchronous>, transform_indices = @transform_3, window_bounds = array<i64: 128, 32>}, {pipeline_mode = #tpu.pipeline_mode<synchronous>, transform_indices = @transform_4, window_bounds = array<i64: 2, 64>}, {pipeline_mode = #tpu.pipeline_mode<synchronous>, transform_indices = @transform_5, window_bounds = array<i64: 2, 32>}, {transform_indices = @transform_6, window_bounds = array<i64: 152, 64>}, {transform_indices = @transform_7, window_bounds = array<i64: 1, 1, 1>}]} {
    %c0 = arith.constant 0 : index
    %c0_0 = arith.constant 0 : index
    %0 = vector.load %arg1[%c0, %c0_0] : memref<152x32xf32, #tpu.memory_space<vmem>>, vector<152x32xf32>
    %c0_1 = arith.constant 0 : index
    %c0_2 = arith.constant 0 : index
    %1 = vector.load %arg2[%c0_1, %c0_2] : memref<152x16xf32, #tpu.memory_space<vmem>>, vector<152x16xf32>
    %c0_3 = arith.constant 0 : index
    %c0_4 = arith.constant 0 : index
    %2 = vector.load %arg3[%c0_3, %c0_4] : memref<48x64xf32, #tpu.memory_space<vmem>>, vector<32x64xf32>
    %cst = arith.constant dense<0.000000e+00> : vector<152x64xf32>
    %3 = tpu.matmul %0, %2, %cst {dimension_numbers = #tpu.dot_dimension_numbers<[1], [0], [0], [1], [0, 0, 1, 1], [], []>} : vector<152x32xf32>, vector<32x64xf32>, vector<152x64xf32> -> vector<152x64xf32>
    %c0_5 = arith.constant 0 : index
    %c0_6 = arith.constant 0 : index
    %4 = vector.load %arg5[%c0_5, %c0_6] : memref<2x64xf32, #tpu.memory_space<vmem>>, vector<1x64xf32>
    %5 = vector.broadcast %4 : vector<1x64xf32> to vector<152x64xf32>
    %6 = arith.addf %3, %5 : vector<152x64xf32>
    %cst_7 = arith.constant 0.000000e+00 : f32
    %7 = vector.broadcast %cst_7 : f32 to vector<152x64xf32>
    %8 = arith.maximumf %6, %7 : vector<152x64xf32>
    %c0_8 = arith.constant 0 : index
    %c0_9 = arith.constant 0 : index
    %9 = vector.load %arg4[%c0_8, %c0_9] : memref<128x32xf32, #tpu.memory_space<vmem>>, vector<64x32xf32>
    %cst_10 = arith.constant dense<0.000000e+00> : vector<152x32xf32>
    %10 = tpu.matmul %8, %9, %cst_10 {dimension_numbers = #tpu.dot_dimension_numbers<[1], [0], [0], [1], [0, 0, 1, 1], [], []>} : vector<152x64xf32>, vector<64x32xf32>, vector<152x32xf32> -> vector<152x32xf32>
    %c0_11 = arith.constant 0 : index
    %c0_12 = arith.constant 0 : index
    %11 = vector.load %arg6[%c0_11, %c0_12] : memref<2x32xf32, #tpu.memory_space<vmem>>, vector<1x32xf32>
    %12 = vector.broadcast %11 : vector<1x32xf32> to vector<152x32xf32>
    %13 = arith.addf %10, %12 : vector<152x32xf32>
    %14 = vector.extract_strided_slice %13 {offsets = [0, 0], sizes = [152, 16], strides = [1, 1]} : vector<152x32xf32> to vector<152x16xf32>
    %15 = vector.extract_strided_slice %13 {offsets = [0, 16], sizes = [152, 16], strides = [1, 1]} : vector<152x32xf32> to vector<152x16xf32>
    %cst_13 = arith.constant 5.000000e-01 : f32
    %16 = vector.broadcast %cst_13 : f32 to vector<152x16xf32>
    %17 = arith.mulf %16, %15 : vector<152x16xf32>
    %18 = math.exp %17 : vector<152x16xf32>
    %19 = arith.mulf %14, %18 : vector<152x16xf32>
    %20 = arith.addf %1, %19 : vector<152x16xf32>
    %c32 = arith.constant 32 : index
    %c0_14 = arith.constant 0 : index
    %21 = vector.load %arg3[%c32, %c0_14] : memref<48x64xf32, #tpu.memory_space<vmem>>, vector<16x64xf32>
    %cst_15 = arith.constant dense<0.000000e+00> : vector<152x64xf32>
    %22 = tpu.matmul %20, %21, %cst_15 {dimension_numbers = #tpu.dot_dimension_numbers<[1], [0], [0], [1], [0, 0, 1, 1], [], []>} : vector<152x16xf32>, vector<16x64xf32>, vector<152x64xf32> -> vector<152x64xf32>
    %c1 = arith.constant 1 : index
    %c0_16 = arith.constant 0 : index
    %23 = vector.load %arg5[%c1, %c0_16] : memref<2x64xf32, #tpu.memory_space<vmem>>, vector<1x64xf32>
    %24 = vector.broadcast %23 : vector<1x64xf32> to vector<152x64xf32>
    %25 = arith.addf %22, %24 : vector<152x64xf32>
    %cst_17 = arith.constant 0.000000e+00 : f32
    %26 = vector.broadcast %cst_17 : f32 to vector<152x64xf32>
    %27 = arith.maximumf %25, %26 : vector<152x64xf32>
    %c64 = arith.constant 64 : index
    %c0_18 = arith.constant 0 : index
    %28 = vector.load %arg4[%c64, %c0_18] : memref<128x32xf32, #tpu.memory_space<vmem>>, vector<64x32xf32>
    %cst_19 = arith.constant dense<0.000000e+00> : vector<152x32xf32>
    %29 = tpu.matmul %27, %28, %cst_19 {dimension_numbers = #tpu.dot_dimension_numbers<[1], [0], [0], [1], [0, 0, 1, 1], [], []>} : vector<152x64xf32>, vector<64x32xf32>, vector<152x32xf32> -> vector<152x32xf32>
    %c1_20 = arith.constant 1 : index
    %c0_21 = arith.constant 0 : index
    %30 = vector.load %arg6[%c1_20, %c0_21] : memref<2x32xf32, #tpu.memory_space<vmem>>, vector<1x32xf32>
    %31 = vector.broadcast %30 : vector<1x32xf32> to vector<152x32xf32>
    %32 = arith.addf %29, %31 : vector<152x32xf32>
    %cst_22 = arith.constant 0.000000e+00 : f32
    %33 = vector.broadcast %cst_22 : f32 to vector<152x32xf32>
    %34 = arith.maximumf %32, %33 : vector<152x32xf32>
    %c0_23 = arith.constant 0 : index
    %c0_24 = arith.constant 0 : index
    %35 = vector.load %arg7[%c0_23, %c0_24] : memref<152x64xf32, #tpu.memory_space<vmem>>, vector<152x16xf32>
    tpu.vector_store %arg7[%c0_23, %c0_24], %20 {strides = array<i32>} : memref<152x64xf32, #tpu.memory_space<vmem>>, vector<152x16xf32>,
    %c0_25 = arith.constant 0 : index
    %c16 = arith.constant 16 : index
    %36 = vector.load %arg7[%c0_25, %c16] : memref<152x64xf32, #tpu.memory_space<vmem>>, vector<152x16xf32>
    tpu.vector_store %arg7[%c0_25, %c16], %19 {strides = array<i32>} : memref<152x64xf32, #tpu.memory_space<vmem>>, vector<152x16xf32>,
    %c0_26 = arith.constant 0 : index
    %c32_27 = arith.constant 32 : index
    %37 = vector.load %arg7[%c0_26, %c32_27] : memref<152x64xf32, #tpu.memory_space<vmem>>, vector<152x32xf32>
    tpu.vector_store %arg7[%c0_26, %c32_27], %34 {strides = array<i32>} : memref<152x64xf32, #tpu.memory_space<vmem>>, vector<152x32xf32>,
    %38 = arith.mulf %18, %18 : vector<152x16xf32>
    %39 = arith.mulf %14, %14 : vector<152x16xf32>
    %40 = arith.addf %38, %39 : vector<152x16xf32>
    %cst_28 = arith.constant 1.000000e+00 : f32
    %41 = vector.broadcast %cst_28 : f32 to vector<152x16xf32>
    %42 = arith.subf %40, %41 : vector<152x16xf32>
    %43 = arith.subf %42, %15 : vector<152x16xf32>
    %c1_i32 = arith.constant 1 : i32
    %44 = arith.cmpi eq, %arg0, %c1_i32 : i32
    %true = arith.constant true
    %45 = arith.xori %44, %true : i1
    %46 = arith.extui %45 : i1 to i32
    %c0_i32 = arith.constant 0 : i32
    %47 = arith.cmpi ne, %46, %c0_i32 : i32
    scf.if %47 {
      %50 = vector.shape_cast %43 : vector<152x16xf32> to vector<1x152x16xf32>
      %cst_30 = arith.constant dense<0.000000e+00> : vector<1xf32>
      %51 = vector.multi_reduction <add>, %50, %cst_30 [1, 2] : vector<1x152x16xf32> to vector<1xf32>
      %52 = vector.shape_cast %51 : vector<1xf32> to vector<1x1x1xf32>
      %53 = vector.extract %52[0, 0, 0] : f32 from vector<1x1x1xf32>
      %54 = vector.broadcast %53 : f32 to vector<1x1x1xf32>
      %c0_31 = arith.constant 0 : index
      %c0_32 = arith.constant 0 : index
      %c0_33 = arith.constant 0 : index
      %55 = vector.load %arg8[%c0_31, %c0_32, %c0_33] : memref<1x1x1xf32, #tpu.memory_space<vmem>>, vector<1x1x1xf32>
      tpu.vector_store %arg8[%c0_31, %c0_32, %c0_33], %54 {strides = array<i32>} : memref<1x1x1xf32, #tpu.memory_space<vmem>>, vector<1x1x1xf32>,
    } else {
    }
    %48 = arith.extui %44 : i1 to i32
    %c0_i32_29 = arith.constant 0 : i32
    %49 = arith.cmpi ne, %48, %c0_i32_29 : i32
    scf.if %49 {
      %50 = tpu.iota {dimensions = array<i32: 0>} : vector<152x1xi32>
      %c148_i32 = arith.constant 148 : i32
      %51 = vector.broadcast %c148_i32 : i32 to vector<152x1xi32>
      %52 = arith.cmpi slt, %50, %51 : vector<152x1xi32>
      %cst_30 = arith.constant 0.000000e+00 : f32
      %53 = vector.shape_cast %52 : vector<152x1xi1> to vector<152x1xi1>
      %54 = vector.broadcast %53 : vector<152x1xi1> to vector<152x16xi1>
      %55 = vector.broadcast %cst_30 : f32 to vector<152x16xf32>
      %56 = arith.select %54, %43, %55 : vector<152x16xi1>, vector<152x16xf32>
      %57 = vector.shape_cast %56 : vector<152x16xf32> to vector<1x152x16xf32>
      %cst_31 = arith.constant dense<0.000000e+00> : vector<1xf32>
      %58 = vector.multi_reduction <add>, %57, %cst_31 [1, 2] : vector<1x152x16xf32> to vector<1xf32>
      %59 = vector.shape_cast %58 : vector<1xf32> to vector<1x1x1xf32>
      %60 = vector.extract %59[0, 0, 0] : f32 from vector<1x1x1xf32>
      %61 = vector.broadcast %60 : f32 to vector<1x1x1xf32>
      %c0_32 = arith.constant 0 : index
      %c0_33 = arith.constant 0 : index
      %c0_34 = arith.constant 0 : index
      %62 = vector.load %arg8[%c0_32, %c0_33, %c0_34] : memref<1x1x1xf32, #tpu.memory_space<vmem>>, vector<1x1x1xf32>
      tpu.vector_store %arg8[%c0_32, %c0_33, %c0_34], %61 {strides = array<i32>} : memref<1x1x1xf32, #tpu.memory_space<vmem>>, vector<1x1x1xf32>,
    } else {
    }
    return
  }
  func.func @transform_0(%arg0: i32) -> (i32, i32) {
    %c0_i32 = arith.constant 0 : i32
    %c0_i32_0 = arith.constant 0 : i32
    return %arg0, %c0_i32 : i32, i32
  }
  func.func @transform_1(%arg0: i32) -> (i32, i32) {
    %c0_i32 = arith.constant 0 : i32
    %c0_i32_0 = arith.constant 0 : i32
    return %arg0, %c0_i32 : i32, i32
  }
  func.func @transform_2(%arg0: i32) -> (i32, i32) {
    %c0_i32 = arith.constant 0 : i32
    %c0_i32_0 = arith.constant 0 : i32
    %c0_i32_1 = arith.constant 0 : i32
    return %c0_i32, %c0_i32_0 : i32, i32
  }
  func.func @transform_3(%arg0: i32) -> (i32, i32) {
    %c0_i32 = arith.constant 0 : i32
    %c0_i32_0 = arith.constant 0 : i32
    %c0_i32_1 = arith.constant 0 : i32
    return %c0_i32, %c0_i32_0 : i32, i32
  }
  func.func @transform_4(%arg0: i32) -> (i32, i32) {
    %c0_i32 = arith.constant 0 : i32
    %c0_i32_0 = arith.constant 0 : i32
    %c0_i32_1 = arith.constant 0 : i32
    return %c0_i32, %c0_i32_0 : i32, i32
  }
  func.func @transform_5(%arg0: i32) -> (i32, i32) {
    %c0_i32 = arith.constant 0 : i32
    %c0_i32_0 = arith.constant 0 : i32
    %c0_i32_1 = arith.constant 0 : i32
    return %c0_i32, %c0_i32_0 : i32, i32
  }
  func.func @transform_6(%arg0: i32) -> (i32, i32) {
    %c0_i32 = arith.constant 0 : i32
    %c0_i32_0 = arith.constant 0 : i32
    return %arg0, %c0_i32 : i32, i32
  }
  func.func @transform_7(%arg0: i32) -> (i32, i32, i32) {
    %c0_i32 = arith.constant 0 : i32
    %c0_i32_0 = arith.constant 0 : i32
    %c0_i32_1 = arith.constant 0 : i32
    return %arg0, %c0_i32, %c0_i32_0 : i32, i32, i32
  }
}

</mosaic_0001>

<llo_original>
// kernel: tpu_custom_call.1
$region0: #{tpu_custom_call.1}
  #allocation0 [shape = 'u32[]', space=smem, size = 0x4, offset = 0x4, fixed_abs, tag = 'smem constant byte address 0x4 - core index']
  #allocation1 [shape = 'u32[72,128]{1,0:T(1,128)}', space=vmem, size = 0x9000, scoped, tag = 'internal scratch']
  %s0 = inlined_call_operand.vmem [shape: f32[300,32], index: 0, kind: input, shape index: {}]
  %s1 = inlined_call_operand.vmem [shape: f32[300,16], index: 1, kind: input, shape index: {}]
  %s2 = inlined_call_operand.vmem [shape: f32[48,64], index: 2, kind: input, shape index: {}]
  %s3 = inlined_call_operand.vmem [shape: f32[128,32], index: 3, kind: input, shape index: {}]
  %s4 = inlined_call_operand.vmem [shape: f32[2,64], index: 4, kind: input, shape index: {}]
  %s5 = inlined_call_operand.vmem [shape: f32[2,32], index: 5, kind: input, shape index: {}]
  %s6 = inlined_call_operand.vmem [shape: f32[300,64], index: 6, kind: output, shape index: {0}]
  %s7 = inlined_call_operand.vmem [shape: f32[2,1,1], index: 7, kind: output, shape index: {1}]
  %8 = xla_tuple %s6, %s7
  %s9 = sld [smem:[#allocation0]]
  $region73: #{tpu_custom_call.1} parent=0
    _
  %s11 = ssub.s32 1, %s9
  %s12 = scalar_select 0, %s11, %s9
  loop: start=0, step=1, limit=4
  $region2: #{tpu_custom_call.1} parent=0 // loop_pre_header
    _
  $region3: #{tpu_custom_call.1} parent=0 // loop_header
    %s14 = sphi 0, %s18
    %p15 = scmp.ge.s32.totalorder %s14, 4
    %s24 = sphi 0, %s26
    %s27 = sphi 0, %s24
    %s28 = sphi 0, %s27
    %s44 = sphi 0, %s28
    %s50 = sphi 0, %s52
    %s53 = sphi 0, %s50
    %s54 = sphi 0, %s53
    %s70 = sphi 0, %s54
    %s74 = sphi 0, %s74
    %s76 = sphi 0, %s74
    %s77 = sphi 0, %s76
    %s91 = sphi 0, %s77
    %s95 = sphi 0, %s95
    %s97 = sphi 0, %s95
    %s98 = sphi 0, %s97
    %s112 = sphi 0, %s98
    %s116 = sphi 0, %s116
    %s118 = sphi 0, %s116
    %s119 = sphi 0, %s118
    %s133 = sphi 0, %s119
    %s137 = sphi 0, %s137
    %s139 = sphi 0, %s137
    %s140 = sphi 0, %s139
    %s154 = sphi 0, %s140
    %s160 = sphi 0, %s162
    %s163 = sphi 0, %s160
    %s164 = sphi 0, %s163
    %s180 = sphi 0, %s164
    %s186 = sphi 0, %s188
    %s189 = sphi 0, %s186
    %s190 = sphi 0, %s189
    %s206 = sphi 0, %s190
  $region4: #{tpu_custom_call.1} parent=0 // loop_header_branch
    %17 = sbr.rel (%p15) target = $region8
  $region5: #{tpu_custom_call.1} parent=0 // loop_body
    %s19 = ssub.s32 %s14, 1
    %s20 = ssub.s32 %s14, 2
    %s21 = sadd.s32 %s14, 1
    %s22 = ssub.s32 %s14, %s21
    %p23 = scmp.eq.s32.totalorder %s22, 0
    %s25 = sadd.s32 %s24, 1
    %s26 = scalar_select %p23, %s24, %s25
    %p29 = pneg %p23
    %p30 = scmp.eq.s32.totalorder %s14, 1
    %p31 = por %p29, %p30
    %p32 = scmp.ne.s32.totalorder %s24, %s27
    %p33 = scmp.eq.s32.totalorder %s14, 0
    %p34 = por %p32, %p33
    %p35 = scmp.ne.s32.totalorder %s24, %s27
    %p36 = scmp.eq.s32.totalorder %s19, 1
    %p37 = por %p35, %p36
    %p38 = scmp.ne.s32.totalorder %s27, %s28
    %p39 = scmp.eq.s32.totalorder %s19, 0
    %p40 = por %p38, %p39
    %p41 = scmp.ne.s32.totalorder %s27, %s28
    %p42 = scmp.eq.s32.totalorder %s20, 1
    %p43 = por %p41, %p42
    %p45 = scmp.ne.s32.totalorder %s28, %s44
    %p46 = scmp.eq.s32.totalorder %s20, 0
    %p47 = por %p45, %p46
    %s48 = ssub.s32 %s14, %s21
    %p49 = scmp.eq.s32.totalorder %s48, 0
    %s51 = sadd.s32 %s50, 1
    %s52 = scalar_select %p49, %s50, %s51
    %p55 = pneg %p49
    %p56 = scmp.eq.s32.totalorder %s14, 1
    %p57 = por %p55, %p56
    %p58 = scmp.ne.s32.totalorder %s50, %s53
    %p59 = scmp.eq.s32.totalorder %s14, 0
    %p60 = por %p58, %p59
    %p61 = scmp.ne.s32.totalorder %s50, %s53
    %p62 = scmp.eq.s32.totalorder %s19, 1
    %p63 = por %p61, %p62
    %p64 = scmp.ne.s32.totalorder %s53, %s54
    %p65 = scmp.eq.s32.totalorder %s19, 0
    %p66 = por %p64, %p65
    %p67 = scmp.ne.s32.totalorder %s53, %s54
    %p68 = scmp.eq.s32.totalorder %s20, 1
    %p69 = por %p67, %p68
    %p71 = scmp.ne.s32.totalorder %s54, %s70
    %p72 = scmp.eq.s32.totalorder %s20, 0
    %p73 = por %p71, %p72
    %s75 = sadd.s32 %s74, 1
    %p78 = scmp.eq.s32.totalorder %s14, 1
    %p79 = scmp.ne.s32.totalorder %s74, %s76
    %p80 = scmp.eq.s32.totalorder %s14, 0
    %p81 = por %p79, %p80
    %p82 = scmp.ne.s32.totalorder %s74, %s76
    %p83 = scmp.eq.s32.totalorder %s19, 1
    %p84 = por %p82, %p83
    %p85 = scmp.ne.s32.totalorder %s76, %s77
    %p86 = scmp.eq.s32.totalorder %s19, 0
    %p87 = por %p85, %p86
    %p88 = scmp.ne.s32.totalorder %s76, %s77
    %p89 = scmp.eq.s32.totalorder %s20, 1
    %p90 = por %p88, %p89
    %p92 = scmp.ne.s32.totalorder %s77, %s91
    %p93 = scmp.eq.s32.totalorder %s20, 0
    %p94 = por %p92, %p93
    %s96 = sadd.s32 %s95, 1
    %p99 = scmp.eq.s32.totalorder %s14, 1
    %p100 = scmp.ne.s32.totalorder %s95, %s97
    %p101 = scmp.eq.s32.totalorder %s14, 0
    %p102 = por %p100, %p101
    %p103 = scmp.ne.s32.totalorder %s95, %s97
    %p104 = scmp.eq.s32.totalorder %s19, 1
    %p105 = por %p103, %p104
    %p106 = scmp.ne.s32.totalorder %s97, %s98
    %p107 = scmp.eq.s32.totalorder %s19, 0
    %p108 = por %p106, %p107
    %p109 = scmp.ne.s32.totalorder %s97, %s98
    %p110 = scmp.eq.s32.totalorder %s20, 1
    %p111 = por %p109, %p110
    %p113 = scmp.ne.s32.totalorder %s98, %s112
    %p114 = scmp.eq.s32.totalorder %s20, 0
    %p115 = por %p113, %p114
    %s117 = sadd.s32 %s116, 1
    %p120 = scmp.eq.s32.totalorder %s14, 1
    %p121 = scmp.ne.s32.totalorder %s116, %s118
    %p122 = scmp.eq.s32.totalorder %s14, 0
    %p123 = por %p121, %p122
    %p124 = scmp.ne.s32.totalorder %s116, %s118
    %p125 = scmp.eq.s32.totalorder %s19, 1
    %p126 = por %p124, %p125
    %p127 = scmp.ne.s32.totalorder %s118, %s119
    %p128 = scmp.eq.s32.totalorder %s19, 0
    %p129 = por %p127, %p128
    %p130 = scmp.ne.s32.totalorder %s118, %s119
    %p131 = scmp.eq.s32.totalorder %s20, 1
    %p132 = por %p130, %p131
    %p134 = scmp.ne.s32.totalorder %s119, %s133
    %p135 = scmp.eq.s32.totalorder %s20, 0
    %p136 = por %p134, %p135
    %s138 = sadd.s32 %s137, 1
    %p141 = scmp.eq.s32.totalorder %s14, 1
    %p142 = scmp.ne.s32.totalorder %s137, %s139
    %p143 = scmp.eq.s32.totalorder %s14, 0
    %p144 = por %p142, %p143
    %p145 = scmp.ne.s32.totalorder %s137, %s139
    %p146 = scmp.eq.s32.totalorder %s19, 1
    %p147 = por %p145, %p146
    %p148 = scmp.ne.s32.totalorder %s139, %s140
    %p149 = scmp.eq.s32.totalorder %s19, 0
    %p150 = por %p148, %p149
    %p151 = scmp.ne.s32.totalorder %s139, %s140
    %p152 = scmp.eq.s32.totalorder %s20, 1
    %p153 = por %p151, %p152
    %p155 = scmp.ne.s32.totalorder %s140, %s154
    %p156 = scmp.eq.s32.totalorder %s20, 0
    %p157 = por %p155, %p156
    %s158 = ssub.s32 %s14, %s21
    %p159 = scmp.eq.s32.totalorder %s158, 0
    %s161 = sadd.s32 %s160, 1
    %s162 = scalar_select %p159, %s160, %s161
    %p165 = pneg %p159
    %p166 = scmp.eq.s32.totalorder %s14, 1
    %p167 = por %p165, %p166
    %p168 = scmp.ne.s32.totalorder %s160, %s163
    %p169 = scmp.eq.s32.totalorder %s14, 0
    %p170 = por %p168, %p169
    %p171 = scmp.ne.s32.totalorder %s160, %s163
    %p172 = scmp.eq.s32.totalorder %s19, 1
    %p173 = por %p171, %p172
    %p174 = scmp.ne.s32.totalorder %s163, %s164
    %p175 = scmp.eq.s32.totalorder %s19, 0
    %p176 = por %p174, %p175
    %p177 = scmp.ne.s32.totalorder %s163, %s164
    %p178 = scmp.eq.s32.totalorder %s20, 1
    %p179 = por %p177, %p178
    %p181 = scmp.ne.s32.totalorder %s164, %s180
    %p182 = scmp.eq.s32.totalorder %s20, 0
    %p183 = por %p181, %p182
    %s184 = ssub.s32 %s14, %s21
    %p185 = scmp.eq.s32.totalorder %s184, 0
    %s187 = sadd.s32 %s186, 1
    %s188 = scalar_select %p185, %s186, %s187
    %p191 = pneg %p185
    %p192 = scmp.eq.s32.totalorder %s14, 1
    %p193 = por %p191, %p192
    %p194 = scmp.ne.s32.totalorder %s186, %s189
    %p195 = scmp.eq.s32.totalorder %s14, 0
    %p196 = por %p194, %p195
    %p197 = scmp.ne.s32.totalorder %s186, %s189
    %p198 = scmp.eq.s32.totalorder %s19, 1
    %p199 = por %p197, %p198
    %p200 = scmp.ne.s32.totalorder %s189, %s190
    %p201 = scmp.eq.s32.totalorder %s19, 0
    %p202 = por %p200, %p201
    %p203 = scmp.ne.s32.totalorder %s189, %s190
    %p204 = scmp.eq.s32.totalorder %s20, 1
    %p205 = por %p203, %p204
    %p207 = scmp.ne.s32.totalorder %s190, %s206
    %p208 = scmp.eq.s32.totalorder %s20, 0
    %p209 = por %p207, %p208
    %p210 = scmp.le.s32.totalorder 1, %s14
    %p211 = scmp.lt.s32.totalorder %s14, 3
    %p212 = pnand %p210, %p211
    %p213 = pneg %p212
    // Predicated region
    $region9: #{tpu_custom_call.1} parent=5 // pred_check
      _
    $region10: #{tpu_custom_call.1} parent=5 // pred_check_branch
      %215 = sbr.rel (%p212) target = $region12
    $region11: #{tpu_custom_call.1} parent=5 // pred_region
      %s216 = ssub.s32 %s14, 1
      // Predicated region
      $region13: #{tpu_custom_call.1} parent=11 // pred_check
        %p217 = pneg %p87
      $region14: #{tpu_custom_call.1} parent=11 // pred_check_branch
        %219 = sbr.rel (%p217) target = $region16
      $region15: #{tpu_custom_call.1} parent=11 // pred_region
        _
      $region16: #{tpu_custom_call.1} parent=11 // pred_fallthru
        _
      // Predicated region
      $region17: #{tpu_custom_call.1} parent=11 // pred_check
        %p220 = pneg %p108
      $region18: #{tpu_custom_call.1} parent=11 // pred_check_branch
        %222 = sbr.rel (%p220) target = $region20
      $region19: #{tpu_custom_call.1} parent=11 // pred_region
        _
      $region20: #{tpu_custom_call.1} parent=11 // pred_fallthru
        _
      // Predicated region
      $region21: #{tpu_custom_call.1} parent=11 // pred_check
        %p223 = pneg %p129
      $region22: #{tpu_custom_call.1} parent=11 // pred_check_branch
        %225 = sbr.rel (%p223) target = $region24
      $region23: #{tpu_custom_call.1} parent=11 // pred_region
        _
      $region24: #{tpu_custom_call.1} parent=11 // pred_fallthru
        _
      // Predicated region
      $region25: #{tpu_custom_call.1} parent=11 // pred_check
        %p226 = pneg %p150
      $region26: #{tpu_custom_call.1} parent=11 // pred_check_branch
        %228 = sbr.rel (%p226) target = $region28
      $region27: #{tpu_custom_call.1} parent=11 // pred_region
        _
      $region28: #{tpu_custom_call.1} parent=11 // pred_fallthru
        _
    $region12: #{tpu_custom_call.1} parent=5 // pred_fallthru
      _
    %p229 = scmp.lt.s32.totalorder %s14, 2
    // Predicated region
    $region29: #{tpu_custom_call.1} parent=5 // pred_check
      %p230 = pneg %p229
    $region30: #{tpu_custom_call.1} parent=5 // pred_check_branch
      %232 = sbr.rel (%p230) target = $region32
    $region31: #{tpu_custom_call.1} parent=5 // pred_region
      // Predicated region
      $region33: #{tpu_custom_call.1} parent=31 // pred_check
        %p233 = pneg %p34
      $region34: #{tpu_custom_call.1} parent=31 // pred_check_branch
        %235 = sbr.rel (%p233) target = $region36
      $region35: #{tpu_custom_call.1} parent=31 // pred_region
        %s236 = smul.u32 19, %s14
        %p237 = scmp.lt.s32.totalorder %s236, 37
        %s238 = scalar_select %p237, %s236, 37
        %s239 = smul.addr %s238, 8
        %s240 = scalar_lea.vmem %s0, %s239
        %s241 = smul.u32 19, %s14
      $region36: #{tpu_custom_call.1} parent=31 // pred_fallthru
        _
      // Predicated region
      $region37: #{tpu_custom_call.1} parent=31 // pred_check
        %p242 = pneg %p60
      $region38: #{tpu_custom_call.1} parent=31 // pred_check_branch
        %244 = sbr.rel (%p242) target = $region40
      $region39: #{tpu_custom_call.1} parent=31 // pred_region
        %s245 = smul.u32 19, %s14
        %p246 = scmp.lt.s32.totalorder %s245, 37
        %s247 = scalar_select %p246, %s245, 37
        %s248 = smul.addr %s247, 8
        %s249 = scalar_lea.vmem %s1, %s248
        %s250 = smul.u32 19, %s14
      $region40: #{tpu_custom_call.1} parent=31 // pred_fallthru
        _
    $region32: #{tpu_custom_call.1} parent=5 // pred_fallthru
      _
    %p251 = scmp.le.s32.totalorder 1, %s14
    %p252 = scmp.lt.s32.totalorder %s14, 3
    %p253 = pnand %p251, %p252
    %p254 = pneg %p253
    // Predicated region
    $region41: #{tpu_custom_call.1} parent=5 // pred_check
      _
    $region42: #{tpu_custom_call.1} parent=5 // pred_check_branch
      %256 = sbr.rel (%p253) target = $region44
    $region43: #{tpu_custom_call.1} parent=5 // pred_region
      %s257 = ssub.s32 %s14, 1
      %s258 = smul.u32 19, %s19
      %p259 = scmp.lt.s32.totalorder %s258, 37
      %s260 = scalar_select %p259, %s258, 37
      %s261 = smul.addr %s260, 8
      %s262 = scalar_lea.vmem %s0, %s261
      %p263 = pneg %p40
      %p264 = pneg %p37
      %s265 = smul.u32 19, %s19
      %p266 = scmp.lt.s32.totalorder %s265, 37
      %s267 = scalar_select %p266, %s265, 37
      %s268 = smul.addr %s267, 8
      %s269 = scalar_lea.vmem %s1, %s268
      %p270 = pneg %p66
      %p271 = pneg %p63
      %p272 = pneg %p87
      %p273 = pneg %p84
      %p274 = pneg %p108
      %p275 = pneg %p105
      %p276 = pneg %p129
      %p277 = pneg %p126
      %p278 = pneg %p150
      %p279 = pneg %p147
      %p280 = pneg %p176
      %p281 = pneg %p173
      %s282 = smul.u32 19, %s19
      %p283 = scmp.lt.s32.totalorder %s282, 37
      %s284 = scalar_select %p283, %s282, 37
      %s285 = smul.addr %s284, 8
      %s286 = scalar_lea.vmem %s6, %s285
      %p287 = pneg %p202
      %p288 = pneg %p199
      %p289 = scmp.lt.s32.totalorder %s19, 1
      %s290 = scalar_select %p289, %s19, 1
      %s291 = scalar_lea.vmem %s7, %s290
      %s292 = smul.u32 19, %s19
      %p293 = scmp.lt.s32.totalorder %s292, 37
      %s294 = scalar_select %p293, %s292, 37
      %s295 = smul.addr %s294, 8
      %s296 = scalar_lea.vmem %s0, %s295
      %s297 = smul.u32 19, %s19
      %s298 = smul.u32 19, %s19
      %p299 = scmp.lt.s32.totalorder %s298, 37
      %s300 = scalar_select %p299, %s298, 37
      %s301 = smul.addr %s300, 8
      %s302 = scalar_lea.vmem %s1, %s301
      %s303 = smul.u32 19, %s19
      %s304 = smul.u32 19, %s19
      %p305 = scmp.lt.s32.totalorder %s304, 37
      %s306 = scalar_select %p305, %s304, 37
      %s307 = smul.addr %s306, 8
      %s308 = scalar_lea.vmem %s6, %s307
      %s309 = smul.u32 19, %s19
      %p310 = scmp.lt.s32.totalorder %s19, 1
      %s311 = scalar_select %p310, %s19, 1
      %s312 = scalar_lea.vmem %s7, %s311
      %v313 = vld [vmem:[%s296] sm:$0xff]
      %v314 = vld [vmem:[%s296 + $0x8] sm:$0xff]
      %v315 = vld [vmem:[%s296 + $0x10] sm:$0xff]
      %v316 = vld [vmem:[%s296 + $0x18] sm:$0xff]
      %v317 = vld [vmem:[%s296 + $0x20] sm:$0xff]
      %v318 = vld [vmem:[%s296 + $0x28] sm:$0xff]
      %v319 = vld [vmem:[%s296 + $0x30] sm:$0xff]
      %v320 = vld [vmem:[%s296 + $0x38] sm:$0xff]
      %v321 = vld [vmem:[%s296 + $0x40] sm:$0xff]
      %v322 = vld [vmem:[%s296 + $0x48] sm:$0xff]
      %v323 = vld [vmem:[%s296 + $0x50] sm:$0xff]
      %v324 = vld [vmem:[%s296 + $0x58] sm:$0xff]
      %v325 = vld [vmem:[%s296 + $0x60] sm:$0xff]
      %v326 = vld [vmem:[%s296 + $0x68] sm:$0xff]
      %v327 = vld [vmem:[%s296 + $0x70] sm:$0xff]
      %v328 = vld [vmem:[%s296 + $0x78] sm:$0xff]
      %v329 = vld [vmem:[%s296 + $0x80] sm:$0xff]
      %v330 = vld [vmem:[%s296 + $0x88] sm:$0xff]
      %v331 = vld [vmem:[%s296 + $0x90] sm:$0xff]
      %v332 = vld [vmem:[%s302] sm:$0xff]
      %v333 = vld [vmem:[%s302 + $0x8] sm:$0xff]
      %v334 = vld [vmem:[%s302 + $0x10] sm:$0xff]
      %v335 = vld [vmem:[%s302 + $0x18] sm:$0xff]
      %v336 = vld [vmem:[%s302 + $0x20] sm:$0xff]
      %v337 = vld [vmem:[%s302 + $0x28] sm:$0xff]
      %v338 = vld [vmem:[%s302 + $0x30] sm:$0xff]
      %v339 = vld [vmem:[%s302 + $0x38] sm:$0xff]
      %v340 = vld [vmem:[%s302 + $0x40] sm:$0xff]
      %v341 = vld [vmem:[%s302 + $0x48] sm:$0xff]
      %v342 = vld [vmem:[%s302 + $0x50] sm:$0xff]
      %v343 = vld [vmem:[%s302 + $0x58] sm:$0xff]
      %v344 = vld [vmem:[%s302 + $0x60] sm:$0xff]
      %v345 = vld [vmem:[%s302 + $0x68] sm:$0xff]
      %v346 = vld [vmem:[%s302 + $0x70] sm:$0xff]
      %v347 = vld [vmem:[%s302 + $0x78] sm:$0xff]
      %v348 = vld [vmem:[%s302 + $0x80] sm:$0xff]
      %v349 = vld [vmem:[%s302 + $0x88] sm:$0xff]
      %v350 = vld [vmem:[%s302 + $0x90] sm:$0xff]
      %v351 = vld [vmem:[%s2] sm:$0xff]
      %v352 = vld [vmem:[%s2 + $0x8] sm:$0xff]
      %v353 = vld [vmem:[%s2 + $0x10] sm:$0xff]
      %v354 = vld [vmem:[%s2 + $0x18] sm:$0xff]
      %v355 = vld [vmem:[%s4] sm:$0x1]
      %v356 = vperm.slane %v355, 0
      %vm357 = vcmask 261120
      %v359 = vsel %vm357, %v313, 0
      %v362 = vsel %vm357, %v314, 0
      %v365 = vsel %vm357, %v315, 0
      %v368 = vsel %vm357, %v316, 0
      %v371 = vsel %vm357, %v317, 0
      %v374 = vsel %vm357, %v318, 0
      %v377 = vsel %vm357, %v319, 0
      %v380 = vsel %vm357, %v320, 0
      %v383 = vsel %vm357, %v321, 0
      %v386 = vsel %vm357, %v322, 0
      %v389 = vsel %vm357, %v323, 0
      %v392 = vsel %vm357, %v324, 0
      %v395 = vsel %vm357, %v325, 0
      %v398 = vsel %vm357, %v326, 0
      %v401 = vsel %vm357, %v327, 0
      %v404 = vsel %vm357, %v328, 0
      %v407 = vsel %vm357, %v329, 0
      %v410 = vsel %vm357, %v330, 0
      %v413 = vsel %vm357, %v331, 0
      %415 = vmatpush.msra.mxu0 0.0
      %416 = vmatpush.msra.mxu0 0.0
      %417 = vmatpush.msra.mxu0 0.0
      %418 = vmatpush.msra.mxu0 0.0
      %419 = vmatpush.msra.mxu0 0.0
      %420 = vmatpush.msra.mxu0 0.0
      %421 = vmatpush.msra.mxu0 0.0
      %422 = vmatpush.msra.mxu0 0.0
      %423 = vmatpush.msra.mxu0 0.0
      %424 = vmatpush.msra.mxu0 0.0
      %425 = vmatpush.msra.mxu0 0.0
      %426 = vmatpush.msra.mxu0 0.0
      %427 = vmatpush.msra.mxu0 %v354
      %428 = vmatpush.msra.mxu0 %v353
      %429 = vmatpush.msra.mxu0 %v352
      %430 = vmatpush.msra.mxu0 %v351
      %431 = vmatmul.f32.gmra.mxu0 %v359
      %v432 = vpop.f32.mrf.mxu0
      %v433 = vadd.f32 %v356, %v432
      %434 = vmatmul.f32.gmra.mxu0 %v362
      %v435 = vpop.f32.mrf.mxu0
      %v436 = vadd.f32 %v356, %v435
      %437 = vmatmul.f32.gmra.mxu0 %v365
      %v438 = vpop.f32.mrf.mxu0
      %v439 = vadd.f32 %v356, %v438
      %440 = vmatmul.f32.gmra.mxu0 %v368
      %v441 = vpop.f32.mrf.mxu0
      %v442 = vadd.f32 %v356, %v441
      %443 = vmatmul.f32.gmra.mxu0 %v371
      %v444 = vpop.f32.mrf.mxu0
      %v445 = vadd.f32 %v356, %v444
      %446 = vmatmul.f32.gmra.mxu0 %v374
      %v447 = vpop.f32.mrf.mxu0
      %v448 = vadd.f32 %v356, %v447
      %449 = vmatmul.f32.gmra.mxu0 %v377
      %v450 = vpop.f32.mrf.mxu0
      %v451 = vadd.f32 %v356, %v450
      %452 = vmatmul.f32.gmra.mxu0 %v380
      %v453 = vpop.f32.mrf.mxu0
      %v454 = vadd.f32 %v356, %v453
      %455 = vmatmul.f32.gmra.mxu0 %v383
      %v456 = vpop.f32.mrf.mxu0
      %v457 = vadd.f32 %v356, %v456
      %458 = vmatmul.f32.gmra.mxu0 %v386
      %v459 = vpop.f32.mrf.mxu0
      %v460 = vadd.f32 %v356, %v459
      %461 = vmatmul.f32.gmra.mxu0 %v389
      %v462 = vpop.f32.mrf.mxu0
      %v463 = vadd.f32 %v356, %v462
      %464 = vmatmul.f32.gmra.mxu0 %v392
      %v465 = vpop.f32.mrf.mxu0
      %v466 = vadd.f32 %v356, %v465
      %467 = vmatmul.f32.gmra.mxu0 %v395
      %v468 = vpop.f32.mrf.mxu0
      %v469 = vadd.f32 %v356, %v468
      %470 = vmatmul.f32.gmra.mxu0 %v398
      %v471 = vpop.f32.mrf.mxu0
      %v472 = vadd.f32 %v356, %v471
      %473 = vmatmul.f32.gmra.mxu0 %v401
      %v474 = vpop.f32.mrf.mxu0
      %v475 = vadd.f32 %v356, %v474
      %476 = vmatmul.f32.gmra.mxu0 %v404
      %v477 = vpop.f32.mrf.mxu0
      %v478 = vadd.f32 %v356, %v477
      %479 = vmatmul.f32.gmra.mxu0 %v407
      %v480 = vpop.f32.mrf.mxu0
      %v481 = vadd.f32 %v356, %v480
      %482 = vmatmul.f32.gmra.mxu0 %v410
      %v483 = vpop.f32.mrf.mxu0
      %v484 = vadd.f32 %v356, %v483
      %485 = vmatmul.f32.gmra.mxu0 %v413
      %v486 = vpop.f32.mrf.mxu0
      %v487 = vadd.f32 %v356, %v486
      %488 = vdwg.mxu0
      %v489 = vmax.f32 %v433, 0.0
      %v490 = vmax.f32 %v436, 0.0
      %v491 = vmax.f32 %v439, 0.0
      %v492 = vmax.f32 %v442, 0.0
      %v493 = vmax.f32 %v445, 0.0
      %v494 = vmax.f32 %v448, 0.0
      %v495 = vmax.f32 %v451, 0.0
      %v496 = vmax.f32 %v454, 0.0
      %v497 = vmax.f32 %v457, 0.0
      %v498 = vmax.f32 %v460, 0.0
      %v499 = vmax.f32 %v463, 0.0
      %v500 = vmax.f32 %v466, 0.0
      %v501 = vmax.f32 %v469, 0.0
      %v502 = vmax.f32 %v472, 0.0
      %v503 = vmax.f32 %v475, 0.0
      %v504 = vmax.f32 %v478, 0.0
      %v505 = vmax.f32 %v481, 0.0
      %v506 = vmax.f32 %v484, 0.0
      %v507 = vmax.f32 %v487, 0.0
      %v508 = vld [vmem:[%s3] sm:$0xff]
      %v509 = vld [vmem:[%s3 + $0x8] sm:$0xff]
      %v510 = vld [vmem:[%s3 + $0x10] sm:$0xff]
      %v511 = vld [vmem:[%s3 + $0x18] sm:$0xff]
      %v512 = vld [vmem:[%s3 + $0x20] sm:$0xff]
      %v513 = vld [vmem:[%s3 + $0x28] sm:$0xff]
      %v514 = vld [vmem:[%s3 + $0x30] sm:$0xff]
      %v515 = vld [vmem:[%s3 + $0x38] sm:$0xff]
      %v516 = vld [vmem:[%s5] sm:$0x1]
      %v517 = vperm.slane %v516, 0
      %vm518 = vcmask 523264
      %v520 = vsel %vm518, %v489, 0
      %v523 = vsel %vm518, %v490, 0
      %v526 = vsel %vm518, %v491, 0
      %v529 = vsel %vm518, %v492, 0
      %v532 = vsel %vm518, %v493, 0
      %v535 = vsel %vm518, %v494, 0
      %v538 = vsel %vm518, %v495, 0
      %v541 = vsel %vm518, %v496, 0
      %v544 = vsel %vm518, %v497, 0
      %v547 = vsel %vm518, %v498, 0
      %v550 = vsel %vm518, %v499, 0
      %v553 = vsel %vm518, %v500, 0
      %v556 = vsel %vm518, %v501, 0
      %v559 = vsel %vm518, %v502, 0
      %v562 = vsel %vm518, %v503, 0
      %v565 = vsel %vm518, %v504, 0
      %v568 = vsel %vm518, %v505, 0
      %v571 = vsel %vm518, %v506, 0
      %v574 = vsel %vm518, %v507, 0
      %576 = vmatpush.msra.mxu0 0.0
      %577 = vmatpush.msra.mxu0 0.0
      %578 = vmatpush.msra.mxu0 0.0
      %579 = vmatpush.msra.mxu0 0.0
      %580 = vmatpush.msra.mxu0 0.0
      %581 = vmatpush.msra.mxu0 0.0
      %582 = vmatpush.msra.mxu0 0.0
      %583 = vmatpush.msra.mxu0 0.0
      %584 = vmatpush.msra.mxu0 %v515
      %585 = vmatpush.msra.mxu0 %v514
      %586 = vmatpush.msra.mxu0 %v513
      %587 = vmatpush.msra.mxu0 %v512
      %588 = vmatpush.msra.mxu0 %v511
      %589 = vmatpush.msra.mxu0 %v510
      %590 = vmatpush.msra.mxu0 %v509
      %591 = vmatpush.msra.mxu0 %v508
      %592 = vmatmul.f32.gmra.mxu0 %v520
      %v593 = vpop.f32.mrf.mxu0
      %v594 = vadd.f32 %v517, %v593
      %595 = vmatmul.f32.gmra.mxu0 %v523
      %v596 = vpop.f32.mrf.mxu0
      %v597 = vadd.f32 %v517, %v596
      %598 = vmatmul.f32.gmra.mxu0 %v526
      %v599 = vpop.f32.mrf.mxu0
      %v600 = vadd.f32 %v517, %v599
      %601 = vmatmul.f32.gmra.mxu0 %v529
      %v602 = vpop.f32.mrf.mxu0
      %v603 = vadd.f32 %v517, %v602
      %604 = vmatmul.f32.gmra.mxu0 %v532
      %v605 = vpop.f32.mrf.mxu0
      %v606 = vadd.f32 %v517, %v605
      %607 = vmatmul.f32.gmra.mxu0 %v535
      %v608 = vpop.f32.mrf.mxu0
      %v609 = vadd.f32 %v517, %v608
      %610 = vmatmul.f32.gmra.mxu0 %v538
      %v611 = vpop.f32.mrf.mxu0
      %v612 = vadd.f32 %v517, %v611
      %613 = vmatmul.f32.gmra.mxu0 %v541
      %v614 = vpop.f32.mrf.mxu0
      %v615 = vadd.f32 %v517, %v614
      %616 = vmatmul.f32.gmra.mxu0 %v544
      %v617 = vpop.f32.mrf.mxu0
      %v618 = vadd.f32 %v517, %v617
      %619 = vmatmul.f32.gmra.mxu0 %v547
      %v620 = vpop.f32.mrf.mxu0
      %v621 = vadd.f32 %v517, %v620
      %622 = vmatmul.f32.gmra.mxu0 %v550
      %v623 = vpop.f32.mrf.mxu0
      %v624 = vadd.f32 %v517, %v623
      %625 = vmatmul.f32.gmra.mxu0 %v553
      %v626 = vpop.f32.mrf.mxu0
      %v627 = vadd.f32 %v517, %v626
      %628 = vmatmul.f32.gmra.mxu0 %v556
      %v629 = vpop.f32.mrf.mxu0
      %v630 = vadd.f32 %v517, %v629
      %631 = vmatmul.f32.gmra.mxu0 %v559
      %v632 = vpop.f32.mrf.mxu0
      %v633 = vadd.f32 %v517, %v632
      %634 = vmatmul.f32.gmra.mxu0 %v562
      %v635 = vpop.f32.mrf.mxu0
      %v636 = vadd.f32 %v517, %v635
      %637 = vmatmul.f32.gmra.mxu0 %v565
      %v638 = vpop.f32.mrf.mxu0
      %v639 = vadd.f32 %v517, %v638
      %640 = vmatmul.f32.gmra.mxu0 %v568
      %v641 = vpop.f32.mrf.mxu0
      %v642 = vadd.f32 %v517, %v641
      %643 = vmatmul.f32.gmra.mxu0 %v571
      %v644 = vpop.f32.mrf.mxu0
      %v645 = vadd.f32 %v517, %v644
      %646 = vmatmul.f32.gmra.mxu0 %v574
      %v647 = vpop.f32.mrf.mxu0
      %v648 = vadd.f32 %v517, %v647
      %649 = vdwg.mxu0
      %v650 = vmul.f32 %v594, 0.5
      %v651 = vmul.f32 %v597, 0.5
      %v652 = vmul.f32 %v600, 0.5
      %v653 = vmul.f32 %v603, 0.5
      %v654 = vmul.f32 %v606, 0.5
      %v655 = vmul.f32 %v609, 0.5
      %v656 = vmul.f32 %v612, 0.5
      %v657 = vmul.f32 %v615, 0.5
      %v658 = vmul.f32 %v618, 0.5
      %v659 = vmul.f32 %v621, 0.5
      %v660 = vmul.f32 %v624, 0.5
      %v661 = vmul.f32 %v627, 0.5
      %v662 = vmul.f32 %v630, 0.5
      %v663 = vmul.f32 %v633, 0.5
      %v664 = vmul.f32 %v636, 0.5
      %v665 = vmul.f32 %v639, 0.5
      %v666 = vmul.f32 %v642, 0.5
      %v667 = vmul.f32 %v645, 0.5
      %v668 = vmul.f32 %v648, 0.5
      %v669 = vmul.f32 %v650, 1.442695
      %v670 = vpow.pop %v669
      %v671 = vmul.f32 %v651, 1.442695
      %v672 = vpow.pop %v671
      %v673 = vmul.f32 %v652, 1.442695
      %v674 = vpow.pop %v673
      %v675 = vmul.f32 %v653, 1.442695
      %v676 = vpow.pop %v675
      %v677 = vmul.f32 %v654, 1.442695
      %v678 = vpow.pop %v677
      %v679 = vmul.f32 %v655, 1.442695
      %v680 = vpow.pop %v679
      %v681 = vmul.f32 %v656, 1.442695
      %v682 = vpow.pop %v681
      %v683 = vmul.f32 %v657, 1.442695
      %v684 = vpow.pop %v683
      %v685 = vmul.f32 %v658, 1.442695
      %v686 = vpow.pop %v685
      %v687 = vmul.f32 %v659, 1.442695
      %v688 = vpow.pop %v687
      %v689 = vmul.f32 %v660, 1.442695
      %v690 = vpow.pop %v689
      %v691 = vmul.f32 %v661, 1.442695
      %v692 = vpow.pop %v691
      %v693 = vmul.f32 %v662, 1.442695
      %v694 = vpow.pop %v693
      %v695 = vmul.f32 %v663, 1.442695
      %v696 = vpow.pop %v695
      %v697 = vmul.f32 %v664, 1.442695
      %v698 = vpow.pop %v697
      %v699 = vmul.f32 %v665, 1.442695
      %v700 = vpow.pop %v699
      %v701 = vmul.f32 %v666, 1.442695
      %v702 = vpow.pop %v701
      %v703 = vmul.f32 %v667, 1.442695
      %v704 = vpow.pop %v703
      %v705 = vmul.f32 %v668, 1.442695
      %v706 = vpow.pop %v705
      %726 = vrot.lane.b32.xlu0 %v670, 112
      %v727 = vpop.permute.xlu0 %726
      %728 = vrot.lane.b32.xlu0 %v672, 112
      %v729 = vpop.permute.xlu0 %728
      %730 = vrot.lane.b32.xlu0 %v674, 112
      %v731 = vpop.permute.xlu0 %730
      %732 = vrot.lane.b32.xlu0 %v676, 112
      %v733 = vpop.permute.xlu0 %732
      %734 = vrot.lane.b32.xlu0 %v678, 112
      %v735 = vpop.permute.xlu0 %734
      %736 = vrot.lane.b32.xlu0 %v680, 112
      %v737 = vpop.permute.xlu0 %736
      %738 = vrot.lane.b32.xlu0 %v682, 112
      %v739 = vpop.permute.xlu0 %738
      %740 = vrot.lane.b32.xlu0 %v684, 112
      %v741 = vpop.permute.xlu0 %740
      %742 = vrot.lane.b32.xlu0 %v686, 112
      %v743 = vpop.permute.xlu0 %742
      %744 = vrot.lane.b32.xlu0 %v688, 112
      %v745 = vpop.permute.xlu0 %744
      %746 = vrot.lane.b32.xlu0 %v690, 112
      %v747 = vpop.permute.xlu0 %746
      %748 = vrot.lane.b32.xlu0 %v692, 112
      %v749 = vpop.permute.xlu0 %748
      %750 = vrot.lane.b32.xlu0 %v694, 112
      %v751 = vpop.permute.xlu0 %750
      %752 = vrot.lane.b32.xlu0 %v696, 112
      %v753 = vpop.permute.xlu0 %752
      %754 = vrot.lane.b32.xlu0 %v698, 112
      %v755 = vpop.permute.xlu0 %754
      %756 = vrot.lane.b32.xlu0 %v700, 112
      %v757 = vpop.permute.xlu0 %756
      %758 = vrot.lane.b32.xlu0 %v702, 112
      %v759 = vpop.permute.xlu0 %758
      %760 = vrot.lane.b32.xlu0 %v704, 112
      %v761 = vpop.permute.xlu0 %760
      %762 = vrot.lane.b32.xlu0 %v706, 112
      %v763 = vpop.permute.xlu0 %762
      %v783 = vmul.f32 %v594, %v727
      %v784 = vmul.f32 %v597, %v729
      %v785 = vmul.f32 %v600, %v731
      %v786 = vmul.f32 %v603, %v733
      %v787 = vmul.f32 %v606, %v735
      %v788 = vmul.f32 %v609, %v737
      %v789 = vmul.f32 %v612, %v739
      %v790 = vmul.f32 %v615, %v741
      %v791 = vmul.f32 %v618, %v743
      %v792 = vmul.f32 %v621, %v745
      %v793 = vmul.f32 %v624, %v747
      %v794 = vmul.f32 %v627, %v749
      %v795 = vmul.f32 %v630, %v751
      %v796 = vmul.f32 %v633, %v753
      %v797 = vmul.f32 %v636, %v755
      %v798 = vmul.f32 %v639, %v757
      %v799 = vmul.f32 %v642, %v759
      %v800 = vmul.f32 %v645, %v761
      %v801 = vmul.f32 %v648, %v763
      %v802 = vadd.f32 %v332, %v783
      %v803 = vadd.f32 %v333, %v784
      %v804 = vadd.f32 %v334, %v785
      %v805 = vadd.f32 %v335, %v786
      %v806 = vadd.f32 %v336, %v787
      %v807 = vadd.f32 %v337, %v788
      %v808 = vadd.f32 %v338, %v789
      %v809 = vadd.f32 %v339, %v790
      %v810 = vadd.f32 %v340, %v791
      %v811 = vadd.f32 %v341, %v792
      %v812 = vadd.f32 %v342, %v793
      %v813 = vadd.f32 %v343, %v794
      %v814 = vadd.f32 %v344, %v795
      %v815 = vadd.f32 %v345, %v796
      %v816 = vadd.f32 %v346, %v797
      %v817 = vadd.f32 %v347, %v798
      %v818 = vadd.f32 %v348, %v799
      %v819 = vadd.f32 %v349, %v800
      %v820 = vadd.f32 %v350, %v801
      %v821 = vld [vmem:[%s2 + $0x20] sm:$0xff]
      %v822 = vld [vmem:[%s2 + $0x28] sm:$0xff]
      %v823 = vld [vmem:[%s4 + $0x1] sm:$0x1]
      %v824 = vperm.slane %v823, 0
      %vm825 = vcmask 130048
      %v827 = vsel %vm825, %v802, 0
      %v830 = vsel %vm825, %v803, 0
      %v833 = vsel %vm825, %v804, 0
      %v836 = vsel %vm825, %v805, 0
      %v839 = vsel %vm825, %v806, 0
      %v842 = vsel %vm825, %v807, 0
      %v845 = vsel %vm825, %v808, 0
      %v848 = vsel %vm825, %v809, 0
      %v851 = vsel %vm825, %v810, 0
      %v854 = vsel %vm825, %v811, 0
      %v857 = vsel %vm825, %v812, 0
      %v860 = vsel %vm825, %v813, 0
      %v863 = vsel %vm825, %v814, 0
      %v866 = vsel %vm825, %v815, 0
      %v869 = vsel %vm825, %v816, 0
      %v872 = vsel %vm825, %v817, 0
      %v875 = vsel %vm825, %v818, 0
      %v878 = vsel %vm825, %v819, 0
      %v881 = vsel %vm825, %v820, 0
      %883 = vmatpush.msra.mxu0 0.0
      %884 = vmatpush.msra.mxu0 0.0
      %885 = vmatpush.msra.mxu0 0.0
      %886 = vmatpush.msra.mxu0 0.0
      %887 = vmatpush.msra.mxu0 0.0
      %888 = vmatpush.msra.mxu0 0.0
      %889 = vmatpush.msra.mxu0 0.0
      %890 = vmatpush.msra.mxu0 0.0
      %891 = vmatpush.msra.mxu0 0.0
      %892 = vmatpush.msra.mxu0 0.0
      %893 = vmatpush.msra.mxu0 0.0
      %894 = vmatpush.msra.mxu0 0.0
      %895 = vmatpush.msra.mxu0 0.0
      %896 = vmatpush.msra.mxu0 0.0
      %897 = vmatpush.msra.mxu0 %v822
      %898 = vmatpush.msra.mxu0 %v821
      %899 = vmatmul.f32.gmra.mxu0 %v827
      %v900 = vpop.f32.mrf.mxu0
      %v901 = vadd.f32 %v824, %v900
      %902 = vmatmul.f32.gmra.mxu0 %v830
      %v903 = vpop.f32.mrf.mxu0
      %v904 = vadd.f32 %v824, %v903
      %905 = vmatmul.f32.gmra.mxu0 %v833
      %v906 = vpop.f32.mrf.mxu0
      %v907 = vadd.f32 %v824, %v906
      %908 = vmatmul.f32.gmra.mxu0 %v836
      %v909 = vpop.f32.mrf.mxu0
      %v910 = vadd.f32 %v824, %v909
      %911 = vmatmul.f32.gmra.mxu0 %v839
      %v912 = vpop.f32.mrf.mxu0
      %v913 = vadd.f32 %v824, %v912
      %914 = vmatmul.f32.gmra.mxu0 %v842
      %v915 = vpop.f32.mrf.mxu0
      %v916 = vadd.f32 %v824, %v915
      %917 = vmatmul.f32.gmra.mxu0 %v845
      %v918 = vpop.f32.mrf.mxu0
      %v919 = vadd.f32 %v824, %v918
      %920 = vmatmul.f32.gmra.mxu0 %v848
      %v921 = vpop.f32.mrf.mxu0
      %v922 = vadd.f32 %v824, %v921
      %923 = vmatmul.f32.gmra.mxu0 %v851
      %v924 = vpop.f32.mrf.mxu0
      %v925 = vadd.f32 %v824, %v924
      %926 = vmatmul.f32.gmra.mxu0 %v854
      %v927 = vpop.f32.mrf.mxu0
      %v928 = vadd.f32 %v824, %v927
      %929 = vmatmul.f32.gmra.mxu0 %v857
      %v930 = vpop.f32.mrf.mxu0
      %v931 = vadd.f32 %v824, %v930
      %932 = vmatmul.f32.gmra.mxu0 %v860
      %v933 = vpop.f32.mrf.mxu0
      %v934 = vadd.f32 %v824, %v933
      %935 = vmatmul.f32.gmra.mxu0 %v863
      %v936 = vpop.f32.mrf.mxu0
      %v937 = vadd.f32 %v824, %v936
      %938 = vmatmul.f32.gmra.mxu0 %v866
      %v939 = vpop.f32.mrf.mxu0
      %v940 = vadd.f32 %v824, %v939
      %941 = vmatmul.f32.gmra.mxu0 %v869
      %v942 = vpop.f32.mrf.mxu0
      %v943 = vadd.f32 %v824, %v942
      %944 = vmatmul.f32.gmra.mxu0 %v872
      %v945 = vpop.f32.mrf.mxu0
      %v946 = vadd.f32 %v824, %v945
      %947 = vmatmul.f32.gmra.mxu0 %v875
      %v948 = vpop.f32.mrf.mxu0
      %v949 = vadd.f32 %v824, %v948
      %950 = vmatmul.f32.gmra.mxu0 %v878
      %v951 = vpop.f32.mrf.mxu0
      %v952 = vadd.f32 %v824, %v951
      %953 = vmatmul.f32.gmra.mxu0 %v881
      %v954 = vpop.f32.mrf.mxu0
      %v955 = vadd.f32 %v824, %v954
      %956 = vdwg.mxu0
      %v957 = vmax.f32 %v901, 0.0
      %v958 = vmax.f32 %v904, 0.0
      %v959 = vmax.f32 %v907, 0.0
      %v960 = vmax.f32 %v910, 0.0
      %v961 = vmax.f32 %v913, 0.0
      %v962 = vmax.f32 %v916, 0.0
      %v963 = vmax.f32 %v919, 0.0
      %v964 = vmax.f32 %v922, 0.0
      %v965 = vmax.f32 %v925, 0.0
      %v966 = vmax.f32 %v928, 0.0
      %v967 = vmax.f32 %v931, 0.0
      %v968 = vmax.f32 %v934, 0.0
      %v969 = vmax.f32 %v937, 0.0
      %v970 = vmax.f32 %v940, 0.0
      %v971 = vmax.f32 %v943, 0.0
      %v972 = vmax.f32 %v946, 0.0
      %v973 = vmax.f32 %v949, 0.0
      %v974 = vmax.f32 %v952, 0.0
      %v975 = vmax.f32 %v955, 0.0
      %v976 = vld [vmem:[%s3 + $0x40] sm:$0xff]
      %v977 = vld [vmem:[%s3 + $0x48] sm:$0xff]
      %v978 = vld [vmem:[%s3 + $0x50] sm:$0xff]
      %v979 = vld [vmem:[%s3 + $0x58] sm:$0xff]
      %v980 = vld [vmem:[%s3 + $0x60] sm:$0xff]
      %v981 = vld [vmem:[%s3 + $0x68] sm:$0xff]
      %v982 = vld [vmem:[%s3 + $0x70] sm:$0xff]
      %v983 = vld [vmem:[%s3 + $0x78] sm:$0xff]
      %v984 = vld [vmem:[%s5 + $0x1] sm:$0x1]
      %v985 = vperm.slane %v984, 0
      %v987 = vsel %vm518, %v957, 0
      %v990 = vsel %vm518, %v958, 0
      %v993 = vsel %vm518, %v959, 0
      %v996 = vsel %vm518, %v960, 0
      %v999 = vsel %vm518, %v961, 0
      %v1002 = vsel %vm518, %v962, 0
      %v1005 = vsel %vm518, %v963, 0
      %v1008 = vsel %vm518, %v964, 0
      %v1011 = vsel %vm518, %v965, 0
      %v1014 = vsel %vm518, %v966, 0
      %v1017 = vsel %vm518, %v967, 0
      %v1020 = vsel %vm518, %v968, 0
      %v1023 = vsel %vm518, %v969, 0
      %v1026 = vsel %vm518, %v970, 0
      %v1029 = vsel %vm518, %v971, 0
      %v1032 = vsel %vm518, %v972, 0
      %v1035 = vsel %vm518, %v973, 0
      %v1038 = vsel %vm518, %v974, 0
      %v1041 = vsel %vm518, %v975, 0
      %1043 = vmatpush.msra.mxu0 0.0
      %1044 = vmatpush.msra.mxu0 0.0
      %1045 = vmatpush.msra.mxu0 0.0
      %1046 = vmatpush.msra.mxu0 0.0
      %1047 = vmatpush.msra.mxu0 0.0
      %1048 = vmatpush.msra.mxu0 0.0
      %1049 = vmatpush.msra.mxu0 0.0
      %1050 = vmatpush.msra.mxu0 0.0
      %1051 = vmatpush.msra.mxu0 %v983
      %1052 = vmatpush.msra.mxu0 %v982
      %1053 = vmatpush.msra.mxu0 %v981
      %1054 = vmatpush.msra.mxu0 %v980
      %1055 = vmatpush.msra.mxu0 %v979
      %1056 = vmatpush.msra.mxu0 %v978
      %1057 = vmatpush.msra.mxu0 %v977
      %1058 = vmatpush.msra.mxu0 %v976
      %1059 = vmatmul.f32.gmra.mxu0 %v987
      %v1060 = vpop.f32.mrf.mxu0
      %v1061 = vadd.f32 %v985, %v1060
      %1062 = vmatmul.f32.gmra.mxu0 %v990
      %v1063 = vpop.f32.mrf.mxu0
      %v1064 = vadd.f32 %v985, %v1063
      %1065 = vmatmul.f32.gmra.mxu0 %v993
      %v1066 = vpop.f32.mrf.mxu0
      %v1067 = vadd.f32 %v985, %v1066
      %1068 = vmatmul.f32.gmra.mxu0 %v996
      %v1069 = vpop.f32.mrf.mxu0
      %v1070 = vadd.f32 %v985, %v1069
      %1071 = vmatmul.f32.gmra.mxu0 %v999
      %v1072 = vpop.f32.mrf.mxu0
      %v1073 = vadd.f32 %v985, %v1072
      %1074 = vmatmul.f32.gmra.mxu0 %v1002
      %v1075 = vpop.f32.mrf.mxu0
      %v1076 = vadd.f32 %v985, %v1075
      %1077 = vmatmul.f32.gmra.mxu0 %v1005
      %v1078 = vpop.f32.mrf.mxu0
      %v1079 = vadd.f32 %v985, %v1078
      %1080 = vmatmul.f32.gmra.mxu0 %v1008
      %v1081 = vpop.f32.mrf.mxu0
      %v1082 = vadd.f32 %v985, %v1081
      %1083 = vmatmul.f32.gmra.mxu0 %v1011
      %v1084 = vpop.f32.mrf.mxu0
      %v1085 = vadd.f32 %v985, %v1084
      %1086 = vmatmul.f32.gmra.mxu0 %v1014
      %v1087 = vpop.f32.mrf.mxu0
      %v1088 = vadd.f32 %v985, %v1087
      %1089 = vmatmul.f32.gmra.mxu0 %v1017
      %v1090 = vpop.f32.mrf.mxu0
      %v1091 = vadd.f32 %v985, %v1090
      %1092 = vmatmul.f32.gmra.mxu0 %v1020
      %v1093 = vpop.f32.mrf.mxu0
      %v1094 = vadd.f32 %v985, %v1093
      %1095 = vmatmul.f32.gmra.mxu0 %v1023
      %v1096 = vpop.f32.mrf.mxu0
      %v1097 = vadd.f32 %v985, %v1096
      %1098 = vmatmul.f32.gmra.mxu0 %v1026
      %v1099 = vpop.f32.mrf.mxu0
      %v1100 = vadd.f32 %v985, %v1099
      %1101 = vmatmul.f32.gmra.mxu0 %v1029
      %v1102 = vpop.f32.mrf.mxu0
      %v1103 = vadd.f32 %v985, %v1102
      %1104 = vmatmul.f32.gmra.mxu0 %v1032
      %v1105 = vpop.f32.mrf.mxu0
      %v1106 = vadd.f32 %v985, %v1105
      %1107 = vmatmul.f32.gmra.mxu0 %v1035
      %v1108 = vpop.f32.mrf.mxu0
      %v1109 = vadd.f32 %v985, %v1108
      %1110 = vmatmul.f32.gmra.mxu0 %v1038
      %v1111 = vpop.f32.mrf.mxu0
      %v1112 = vadd.f32 %v985, %v1111
      %1113 = vmatmul.f32.gmra.mxu0 %v1041
      %v1114 = vpop.f32.mrf.mxu0
      %v1115 = vadd.f32 %v985, %v1114
      %1116 = vdwg.mxu0
      %v1117 = vmax.f32 %v1061, 0.0
      %v1118 = vmax.f32 %v1064, 0.0
      %v1119 = vmax.f32 %v1067, 0.0
      %v1120 = vmax.f32 %v1070, 0.0
      %v1121 = vmax.f32 %v1073, 0.0
      %v1122 = vmax.f32 %v1076, 0.0
      %v1123 = vmax.f32 %v1079, 0.0
      %v1124 = vmax.f32 %v1082, 0.0
      %v1125 = vmax.f32 %v1085, 0.0
      %v1126 = vmax.f32 %v1088, 0.0
      %v1127 = vmax.f32 %v1091, 0.0
      %v1128 = vmax.f32 %v1094, 0.0
      %v1129 = vmax.f32 %v1097, 0.0
      %v1130 = vmax.f32 %v1100, 0.0
      %v1131 = vmax.f32 %v1103, 0.0
      %v1132 = vmax.f32 %v1106, 0.0
      %v1133 = vmax.f32 %v1109, 0.0
      %v1134 = vmax.f32 %v1112, 0.0
      %v1135 = vmax.f32 %v1115, 0.0
      %1136 = vst.msk [vmem:[%s308] sm:$0xff] %vm825, %v802
      %1137 = vst.msk [vmem:[%s308 + $0x8] sm:$0xff] %vm825, %v803
      %1138 = vst.msk [vmem:[%s308 + $0x10] sm:$0xff] %vm825, %v804
      %1139 = vst.msk [vmem:[%s308 + $0x18] sm:$0xff] %vm825, %v805
      %1140 = vst.msk [vmem:[%s308 + $0x20] sm:$0xff] %vm825, %v806
      %1141 = vst.msk [vmem:[%s308 + $0x28] sm:$0xff] %vm825, %v807
      %1142 = vst.msk [vmem:[%s308 + $0x30] sm:$0xff] %vm825, %v808
      %1143 = vst.msk [vmem:[%s308 + $0x38] sm:$0xff] %vm825, %v809
      %1144 = vst.msk [vmem:[%s308 + $0x40] sm:$0xff] %vm825, %v810
      %1145 = vst.msk [vmem:[%s308 + $0x48] sm:$0xff] %vm825, %v811
      %1146 = vst.msk [vmem:[%s308 + $0x50] sm:$0xff] %vm825, %v812
      %1147 = vst.msk [vmem:[%s308 + $0x58] sm:$0xff] %vm825, %v813
      %1148 = vst.msk [vmem:[%s308 + $0x60] sm:$0xff] %vm825, %v814
      %1149 = vst.msk [vmem:[%s308 + $0x68] sm:$0xff] %vm825, %v815
      %1150 = vst.msk [vmem:[%s308 + $0x70] sm:$0xff] %vm825, %v816
      %1151 = vst.msk [vmem:[%s308 + $0x78] sm:$0xff] %vm825, %v817
      %1152 = vst.msk [vmem:[%s308 + $0x80] sm:$0xff] %vm825, %v818
      %1153 = vst.msk [vmem:[%s308 + $0x88] sm:$0xff] %vm825, %v819
      %1154 = vst.msk [vmem:[%s308 + $0x90] sm:$0xff] %vm825, %v820
      %1174 = vrot.lane.b32.xlu0 %v783, 16
      %v1175 = vpop.permute.xlu0 %1174
      %1176 = vrot.lane.b32.xlu0 %v784, 16
      %v1177 = vpop.permute.xlu0 %1176
      %1178 = vrot.lane.b32.xlu0 %v785, 16
      %v1179 = vpop.permute.xlu0 %1178
      %1180 = vrot.lane.b32.xlu0 %v786, 16
      %v1181 = vpop.permute.xlu0 %1180
      %1182 = vrot.lane.b32.xlu0 %v787, 16
      %v1183 = vpop.permute.xlu0 %1182
      %1184 = vrot.lane.b32.xlu0 %v788, 16
      %v1185 = vpop.permute.xlu0 %1184
      %1186 = vrot.lane.b32.xlu0 %v789, 16
      %v1187 = vpop.permute.xlu0 %1186
      %1188 = vrot.lane.b32.xlu0 %v790, 16
      %v1189 = vpop.permute.xlu0 %1188
      %1190 = vrot.lane.b32.xlu0 %v791, 16
      %v1191 = vpop.permute.xlu0 %1190
      %1192 = vrot.lane.b32.xlu0 %v792, 16
      %v1193 = vpop.permute.xlu0 %1192
      %1194 = vrot.lane.b32.xlu0 %v793, 16
      %v1195 = vpop.permute.xlu0 %1194
      %1196 = vrot.lane.b32.xlu0 %v794, 16
      %v1197 = vpop.permute.xlu0 %1196
      %1198 = vrot.lane.b32.xlu0 %v795, 16
      %v1199 = vpop.permute.xlu0 %1198
      %1200 = vrot.lane.b32.xlu0 %v796, 16
      %v1201 = vpop.permute.xlu0 %1200
      %1202 = vrot.lane.b32.xlu0 %v797, 16
      %v1203 = vpop.permute.xlu0 %1202
      %1204 = vrot.lane.b32.xlu0 %v798, 16
      %v1205 = vpop.permute.xlu0 %1204
      %1206 = vrot.lane.b32.xlu0 %v799, 16
      %v1207 = vpop.permute.xlu0 %1206
      %1208 = vrot.lane.b32.xlu0 %v800, 16
      %v1209 = vpop.permute.xlu0 %1208
      %1210 = vrot.lane.b32.xlu0 %v801, 16
      %v1211 = vpop.permute.xlu0 %1210
      %vm1231 = vcmask 261248
      %1232 = vst.msk [vmem:[%s308] sm:$0xff] %vm1231, %v1175
      %1233 = vst.msk [vmem:[%s308 + $0x8] sm:$0xff] %vm1231, %v1177
      %1234 = vst.msk [vmem:[%s308 + $0x10] sm:$0xff] %vm1231, %v1179
      %1235 = vst.msk [vmem:[%s308 + $0x18] sm:$0xff] %vm1231, %v1181
      %1236 = vst.msk [vmem:[%s308 + $0x20] sm:$0xff] %vm1231, %v1183
      %1237 = vst.msk [vmem:[%s308 + $0x28] sm:$0xff] %vm1231, %v1185
      %1238 = vst.msk [vmem:[%s308 + $0x30] sm:$0xff] %vm1231, %v1187
      %1239 = vst.msk [vmem:[%s308 + $0x38] sm:$0xff] %vm1231, %v1189
      %1240 = vst.msk [vmem:[%s308 + $0x40] sm:$0xff] %vm1231, %v1191
      %1241 = vst.msk [vmem:[%s308 + $0x48] sm:$0xff] %vm1231, %v1193
      %1242 = vst.msk [vmem:[%s308 + $0x50] sm:$0xff] %vm1231, %v1195
      %1243 = vst.msk [vmem:[%s308 + $0x58] sm:$0xff] %vm1231, %v1197
      %1244 = vst.msk [vmem:[%s308 + $0x60] sm:$0xff] %vm1231, %v1199
      %1245 = vst.msk [vmem:[%s308 + $0x68] sm:$0xff] %vm1231, %v1201
      %1246 = vst.msk [vmem:[%s308 + $0x70] sm:$0xff] %vm1231, %v1203
      %1247 = vst.msk [vmem:[%s308 + $0x78] sm:$0xff] %vm1231, %v1205
      %1248 = vst.msk [vmem:[%s308 + $0x80] sm:$0xff] %vm1231, %v1207
      %1249 = vst.msk [vmem:[%s308 + $0x88] sm:$0xff] %vm1231, %v1209
      %1250 = vst.msk [vmem:[%s308 + $0x90] sm:$0xff] %vm1231, %v1211
      %1270 = vrot.lane.b32.xlu0 %v1117, 32
      %v1271 = vpop.permute.xlu0 %1270
      %1272 = vrot.lane.b32.xlu0 %v1118, 32
      %v1273 = vpop.permute.xlu0 %1272
      %1274 = vrot.lane.b32.xlu0 %v1119, 32
      %v1275 = vpop.permute.xlu0 %1274
      %1276 = vrot.lane.b32.xlu0 %v1120, 32
      %v1277 = vpop.permute.xlu0 %1276
      %1278 = vrot.lane.b32.xlu0 %v1121, 32
      %v1279 = vpop.permute.xlu0 %1278
      %1280 = vrot.lane.b32.xlu0 %v1122, 32
      %v1281 = vpop.permute.xlu0 %1280
      %1282 = vrot.lane.b32.xlu0 %v1123, 32
      %v1283 = vpop.permute.xlu0 %1282
      %1284 = vrot.lane.b32.xlu0 %v1124, 32
      %v1285 = vpop.permute.xlu0 %1284
      %1286 = vrot.lane.b32.xlu0 %v1125, 32
      %v1287 = vpop.permute.xlu0 %1286
      %1288 = vrot.lane.b32.xlu0 %v1126, 32
      %v1289 = vpop.permute.xlu0 %1288
      %1290 = vrot.lane.b32.xlu0 %v1127, 32
      %v1291 = vpop.permute.xlu0 %1290
      %1292 = vrot.lane.b32.xlu0 %v1128, 32
      %v1293 = vpop.permute.xlu0 %1292
      %1294 = vrot.lane.b32.xlu0 %v1129, 32
      %v1295 = vpop.permute.xlu0 %1294
      %1296 = vrot.lane.b32.xlu0 %v1130, 32
      %v1297 = vpop.permute.xlu0 %1296
      %1298 = vrot.lane.b32.xlu0 %v1131, 32
      %v1299 = vpop.permute.xlu0 %1298
      %1300 = vrot.lane.b32.xlu0 %v1132, 32
      %v1301 = vpop.permute.xlu0 %1300
      %1302 = vrot.lane.b32.xlu0 %v1133, 32
      %v1303 = vpop.permute.xlu0 %1302
      %1304 = vrot.lane.b32.xlu0 %v1134, 32
      %v1305 = vpop.permute.xlu0 %1304
      %1306 = vrot.lane.b32.xlu0 %v1135, 32
      %v1307 = vpop.permute.xlu0 %1306
      %vm1327 = vcmask 523520
      %1328 = vst.msk [vmem:[%s308] sm:$0xff] %vm1327, %v1271
      %1329 = vst.msk [vmem:[%s308 + $0x8] sm:$0xff] %vm1327, %v1273
      %1330 = vst.msk [vmem:[%s308 + $0x10] sm:$0xff] %vm1327, %v1275
      %1331 = vst.msk [vmem:[%s308 + $0x18] sm:$0xff] %vm1327, %v1277
      %1332 = vst.msk [vmem:[%s308 + $0x20] sm:$0xff] %vm1327, %v1279
      %1333 = vst.msk [vmem:[%s308 + $0x28] sm:$0xff] %vm1327, %v1281
      %1334 = vst.msk [vmem:[%s308 + $0x30] sm:$0xff] %vm1327, %v1283
      %1335 = vst.msk [vmem:[%s308 + $0x38] sm:$0xff] %vm1327, %v1285
      %1336 = vst.msk [vmem:[%s308 + $0x40] sm:$0xff] %vm1327, %v1287
      %1337 = vst.msk [vmem:[%s308 + $0x48] sm:$0xff] %vm1327, %v1289
      %1338 = vst.msk [vmem:[%s308 + $0x50] sm:$0xff] %vm1327, %v1291
      %1339 = vst.msk [vmem:[%s308 + $0x58] sm:$0xff] %vm1327, %v1293
      %1340 = vst.msk [vmem:[%s308 + $0x60] sm:$0xff] %vm1327, %v1295
      %1341 = vst.msk [vmem:[%s308 + $0x68] sm:$0xff] %vm1327, %v1297
      %1342 = vst.msk [vmem:[%s308 + $0x70] sm:$0xff] %vm1327, %v1299
      %1343 = vst.msk [vmem:[%s308 + $0x78] sm:$0xff] %vm1327, %v1301
      %1344 = vst.msk [vmem:[%s308 + $0x80] sm:$0xff] %vm1327, %v1303
      %1345 = vst.msk [vmem:[%s308 + $0x88] sm:$0xff] %vm1327, %v1305
      %1346 = vst.msk [vmem:[%s308 + $0x90] sm:$0xff] %vm1327, %v1307
      %v1347 = vmul.f32 %v670, %v670
      %v1348 = vmul.f32 %v672, %v672
      %v1349 = vmul.f32 %v674, %v674
      %v1350 = vmul.f32 %v676, %v676
      %v1351 = vmul.f32 %v678, %v678
      %v1352 = vmul.f32 %v680, %v680
      %v1353 = vmul.f32 %v682, %v682
      %v1354 = vmul.f32 %v684, %v684
      %v1355 = vmul.f32 %v686, %v686
      %v1356 = vmul.f32 %v688, %v688
      %v1357 = vmul.f32 %v690, %v690
      %v1358 = vmul.f32 %v692, %v692
      %v1359 = vmul.f32 %v694, %v694
      %v1360 = vmul.f32 %v696, %v696
      %v1361 = vmul.f32 %v698, %v698
      %v1362 = vmul.f32 %v700, %v700
      %v1363 = vmul.f32 %v702, %v702
      %v1364 = vmul.f32 %v704, %v704
      %v1365 = vmul.f32 %v706, %v706
      %v1366 = vmul.f32 %v594, %v594
      %v1367 = vmul.f32 %v597, %v597
      %v1368 = vmul.f32 %v600, %v600
      %v1369 = vmul.f32 %v603, %v603
      %v1370 = vmul.f32 %v606, %v606
      %v1371 = vmul.f32 %v609, %v609
      %v1372 = vmul.f32 %v612, %v612
      %v1373 = vmul.f32 %v615, %v615
      %v1374 = vmul.f32 %v618, %v618
      %v1375 = vmul.f32 %v621, %v621
      %v1376 = vmul.f32 %v624, %v624
      %v1377 = vmul.f32 %v627, %v627
      %v1378 = vmul.f32 %v630, %v630
      %v1379 = vmul.f32 %v633, %v633
      %v1380 = vmul.f32 %v636, %v636
      %v1381 = vmul.f32 %v639, %v639
      %v1382 = vmul.f32 %v642, %v642
      %v1383 = vmul.f32 %v645, %v645
      %v1384 = vmul.f32 %v648, %v648
      %1404 = vrot.lane.b32.xlu0 %v1366, 16
      %v1405 = vpop.permute.xlu0 %1404
      %1406 = vrot.lane.b32.xlu0 %v1367, 16
      %v1407 = vpop.permute.xlu0 %1406
      %1408 = vrot.lane.b32.xlu0 %v1368, 16
      %v1409 = vpop.permute.xlu0 %1408
      %1410 = vrot.lane.b32.xlu0 %v1369, 16
      %v1411 = vpop.permute.xlu0 %1410
      %1412 = vrot.lane.b32.xlu0 %v1370, 16
      %v1413 = vpop.permute.xlu0 %1412
      %1414 = vrot.lane.b32.xlu0 %v1371, 16
      %v1415 = vpop.permute.xlu0 %1414
      %1416 = vrot.lane.b32.xlu0 %v1372, 16
      %v1417 = vpop.permute.xlu0 %1416
      %1418 = vrot.lane.b32.xlu0 %v1373, 16
      %v1419 = vpop.permute.xlu0 %1418
      %1420 = vrot.lane.b32.xlu0 %v1374, 16
      %v1421 = vpop.permute.xlu0 %1420
      %1422 = vrot.lane.b32.xlu0 %v1375, 16
      %v1423 = vpop.permute.xlu0 %1422
      %1424 = vrot.lane.b32.xlu0 %v1376, 16
      %v1425 = vpop.permute.xlu0 %1424
      %1426 = vrot.lane.b32.xlu0 %v1377, 16
      %v1427 = vpop.permute.xlu0 %1426
      %1428 = vrot.lane.b32.xlu0 %v1378, 16
      %v1429 = vpop.permute.xlu0 %1428
      %1430 = vrot.lane.b32.xlu0 %v1379, 16
      %v1431 = vpop.permute.xlu0 %1430
      %1432 = vrot.lane.b32.xlu0 %v1380, 16
      %v1433 = vpop.permute.xlu0 %1432
      %1434 = vrot.lane.b32.xlu0 %v1381, 16
      %v1435 = vpop.permute.xlu0 %1434
      %1436 = vrot.lane.b32.xlu0 %v1382, 16
      %v1437 = vpop.permute.xlu0 %1436
      %1438 = vrot.lane.b32.xlu0 %v1383, 16
      %v1439 = vpop.permute.xlu0 %1438
      %1440 = vrot.lane.b32.xlu0 %v1384, 16
      %v1441 = vpop.permute.xlu0 %1440
      %v1461 = vadd.f32 %v1347, %v1405
      %v1462 = vadd.f32 %v1348, %v1407
      %v1463 = vadd.f32 %v1349, %v1409
      %v1464 = vadd.f32 %v1350, %v1411
      %v1465 = vadd.f32 %v1351, %v1413
      %v1466 = vadd.f32 %v1352, %v1415
      %v1467 = vadd.f32 %v1353, %v1417
      %v1468 = vadd.f32 %v1354, %v1419
      %v1469 = vadd.f32 %v1355, %v1421
      %v1470 = vadd.f32 %v1356, %v1423
      %v1471 = vadd.f32 %v1357, %v1425
      %v1472 = vadd.f32 %v1358, %v1427
      %v1473 = vadd.f32 %v1359, %v1429
      %v1474 = vadd.f32 %v1360, %v1431
      %v1475 = vadd.f32 %v1361, %v1433
      %v1476 = vadd.f32 %v1362, %v1435
      %v1477 = vadd.f32 %v1363, %v1437
      %v1478 = vadd.f32 %v1364, %v1439
      %v1479 = vadd.f32 %v1365, %v1441
      %v1480 = vsub.f32 %v1461, 1.0
      %v1481 = vsub.f32 %v1462, 1.0
      %v1482 = vsub.f32 %v1463, 1.0
      %v1483 = vsub.f32 %v1464, 1.0
      %v1484 = vsub.f32 %v1465, 1.0
      %v1485 = vsub.f32 %v1466, 1.0
      %v1486 = vsub.f32 %v1467, 1.0
      %v1487 = vsub.f32 %v1468, 1.0
      %v1488 = vsub.f32 %v1469, 1.0
      %v1489 = vsub.f32 %v1470, 1.0
      %v1490 = vsub.f32 %v1471, 1.0
      %v1491 = vsub.f32 %v1472, 1.0
      %v1492 = vsub.f32 %v1473, 1.0
      %v1493 = vsub.f32 %v1474, 1.0
      %v1494 = vsub.f32 %v1475, 1.0
      %v1495 = vsub.f32 %v1476, 1.0
      %v1496 = vsub.f32 %v1477, 1.0
      %v1497 = vsub.f32 %v1478, 1.0
      %v1498 = vsub.f32 %v1479, 1.0
      %v1499 = vsub.f32 %v1480, %v594
      %v1500 = vsub.f32 %v1481, %v597
      %v1501 = vsub.f32 %v1482, %v600
      %v1502 = vsub.f32 %v1483, %v603
      %v1503 = vsub.f32 %v1484, %v606
      %v1504 = vsub.f32 %v1485, %v609
      %v1505 = vsub.f32 %v1486, %v612
      %v1506 = vsub.f32 %v1487, %v615
      %v1507 = vsub.f32 %v1488, %v618
      %v1508 = vsub.f32 %v1489, %v621
      %v1509 = vsub.f32 %v1490, %v624
      %v1510 = vsub.f32 %v1491, %v627
      %v1511 = vsub.f32 %v1492, %v630
      %v1512 = vsub.f32 %v1493, %v633
      %v1513 = vsub.f32 %v1494, %v636
      %v1514 = vsub.f32 %v1495, %v639
      %v1515 = vsub.f32 %v1496, %v642
      %v1516 = vsub.f32 %v1497, %v645
      %v1517 = vsub.f32 %v1498, %v648
      %p1518 = scmp.eq.s32.totalorder %s19, 1
      %p1519 = scmp.ne.s32.totalorder %s19, 1
      // Predicated region
      $region45: #{tpu_custom_call.1} parent=43 // pred_check
        %p1520 = pneg %p1519
      $region46: #{tpu_custom_call.1} parent=43 // pred_check_branch
        %1522 = sbr.rel (%p1520) target = $region48
      $region47: #{tpu_custom_call.1} parent=43 // pred_region
        %1542 = vrot.lane.b32.xlu0 %v1499, 112
        %v1543 = vpop.permute.xlu0 %1542
        %1544 = vrot.lane.b32.xlu0 %v1500, 112
        %v1545 = vpop.permute.xlu0 %1544
        %1546 = vrot.lane.b32.xlu0 %v1501, 112
        %v1547 = vpop.permute.xlu0 %1546
        %1548 = vrot.lane.b32.xlu0 %v1502, 112
        %v1549 = vpop.permute.xlu0 %1548
        %1550 = vrot.lane.b32.xlu0 %v1503, 112
        %v1551 = vpop.permute.xlu0 %1550
        %1552 = vrot.lane.b32.xlu0 %v1504, 112
        %v1553 = vpop.permute.xlu0 %1552
        %1554 = vrot.lane.b32.xlu0 %v1505, 112
        %v1555 = vpop.permute.xlu0 %1554
        %1556 = vrot.lane.b32.xlu0 %v1506, 112
        %v1557 = vpop.permute.xlu0 %1556
        %1558 = vrot.lane.b32.xlu0 %v1507, 112
        %v1559 = vpop.permute.xlu0 %1558
        %1560 = vrot.lane.b32.xlu0 %v1508, 112
        %v1561 = vpop.permute.xlu0 %1560
        %1562 = vrot.lane.b32.xlu0 %v1509, 112
        %v1563 = vpop.permute.xlu0 %1562
        %1564 = vrot.lane.b32.xlu0 %v1510, 112
        %v1565 = vpop.permute.xlu0 %1564
        %1566 = vrot.lane.b32.xlu0 %v1511, 112
        %v1567 = vpop.permute.xlu0 %1566
        %1568 = vrot.lane.b32.xlu0 %v1512, 112
        %v1569 = vpop.permute.xlu0 %1568
        %1570 = vrot.lane.b32.xlu0 %v1513, 112
        %v1571 = vpop.permute.xlu0 %1570
        %1572 = vrot.lane.b32.xlu0 %v1514, 112
        %v1573 = vpop.permute.xlu0 %1572
        %1574 = vrot.lane.b32.xlu0 %v1515, 112
        %v1575 = vpop.permute.xlu0 %1574
        %1576 = vrot.lane.b32.xlu0 %v1516, 112
        %v1577 = vpop.permute.xlu0 %1576
        %1578 = vrot.lane.b32.xlu0 %v1517, 112
        %v1579 = vpop.permute.xlu0 %1578
        %v1599 = vsel %vm825, %v1543, 0.0
        %v1600 = vsel %vm825, %v1545, 0.0
        %v1601 = vadd.f32 %v1599, %v1600
        %v1602 = vsel %vm825, %v1547, 0.0
        %v1603 = vadd.f32 %v1601, %v1602
        %v1604 = vsel %vm825, %v1549, 0.0
        %v1605 = vadd.f32 %v1603, %v1604
        %v1606 = vsel %vm825, %v1551, 0.0
        %v1607 = vadd.f32 %v1605, %v1606
        %v1608 = vsel %vm825, %v1553, 0.0
        %v1609 = vadd.f32 %v1607, %v1608
        %v1610 = vsel %vm825, %v1555, 0.0
        %v1611 = vadd.f32 %v1609, %v1610
        %v1612 = vsel %vm825, %v1557, 0.0
        %v1613 = vadd.f32 %v1611, %v1612
        %v1614 = vsel %vm825, %v1559, 0.0
        %v1615 = vadd.f32 %v1613, %v1614
        %v1616 = vsel %vm825, %v1561, 0.0
        %v1617 = vadd.f32 %v1615, %v1616
        %v1618 = vsel %vm825, %v1563, 0.0
        %v1619 = vadd.f32 %v1617, %v1618
        %v1620 = vsel %vm825, %v1565, 0.0
        %v1621 = vadd.f32 %v1619, %v1620
        %v1622 = vsel %vm825, %v1567, 0.0
        %v1623 = vadd.f32 %v1621, %v1622
        %v1624 = vsel %vm825, %v1569, 0.0
        %v1625 = vadd.f32 %v1623, %v1624
        %v1626 = vsel %vm825, %v1571, 0.0
        %v1627 = vadd.f32 %v1625, %v1626
        %v1628 = vsel %vm825, %v1573, 0.0
        %v1629 = vadd.f32 %v1627, %v1628
        %v1630 = vsel %vm825, %v1575, 0.0
        %v1631 = vadd.f32 %v1629, %v1630
        %v1632 = vsel %vm825, %v1577, 0.0
        %v1633 = vadd.f32 %v1631, %v1632
        %v1634 = vsel %vm825, %v1579, 0.0
        %v1635 = vadd.f32 %v1633, %v1634
        %1636 = vadd.xlane.f32.xlu0 %v1635
        %v1637 = vpop.xlane.xlu0 %1636
        %v1638 = vrot.slane %v1637, 4
        %v1639 = vadd.f32 %v1637, %v1638
        %v1640 = vrot.slane %v1639, 2
        %v1641 = vadd.f32 %v1639, %v1640
        %v1642 = vrot.slane %v1641, 1
        %v1643 = vadd.f32 %v1641, %v1642
        %s1644 = vtos %v1643
        %v1645 = vstv %s1644
        %vm1646 = vcmask 0
        %1647 = vst.msk [vmem:[%s312] sm:$0x1] %vm1646, %v1645
      $region48: #{tpu_custom_call.1} parent=43 // pred_fallthru
        _
      // Predicated region
      $region49: #{tpu_custom_call.1} parent=43 // pred_check
        %p1648 = pneg %p1518
      $region50: #{tpu_custom_call.1} parent=43 // pred_check_branch
        %1650 = sbr.rel (%p1648) target = $region52
      $region51: #{tpu_custom_call.1} parent=43 // pred_region
        %v1651 = vlaneseq
        %v1652 = vshrl.u32 %v1651, 7
        %v1653 = vadd.s32 %v1652, 8
        %v1654 = vadd.s32 %v1652, 16
        %v1655 = vadd.s32 %v1652, 24
        %v1656 = vadd.s32 %v1652, 32
        %v1657 = vadd.s32 %v1652, 40
        %v1658 = vadd.s32 %v1652, 48
        %v1659 = vadd.s32 %v1652, 56
        %v1660 = vadd.s32 %v1652, 64
        %v1661 = vadd.s32 %v1652, 72
        %v1662 = vadd.s32 %v1652, 80
        %v1663 = vadd.s32 %v1652, 88
        %v1664 = vadd.s32 %v1652, 96
        %v1665 = vadd.s32 %v1652, 104
        %v1666 = vadd.s32 %v1652, 112
        %v1667 = vadd.s32 %v1652, 120
        %v1668 = vadd.s32 %v1652, 128
        %v1669 = vadd.s32 %v1652, 136
        %v1670 = vadd.s32 %v1652, 144
        %vm1671 = vcmp.lt.s32.totalorder %v1652, 148
        %vm1672 = vcmp.lt.s32.totalorder %v1653, 148
        %vm1673 = vcmp.lt.s32.totalorder %v1654, 148
        %vm1674 = vcmp.lt.s32.totalorder %v1655, 148
        %vm1675 = vcmp.lt.s32.totalorder %v1656, 148
        %vm1676 = vcmp.lt.s32.totalorder %v1657, 148
        %vm1677 = vcmp.lt.s32.totalorder %v1658, 148
        %vm1678 = vcmp.lt.s32.totalorder %v1659, 148
        %vm1679 = vcmp.lt.s32.totalorder %v1660, 148
        %vm1680 = vcmp.lt.s32.totalorder %v1661, 148
        %vm1681 = vcmp.lt.s32.totalorder %v1662, 148
        %vm1682 = vcmp.lt.s32.totalorder %v1663, 148
        %vm1683 = vcmp.lt.s32.totalorder %v1664, 148
        %vm1684 = vcmp.lt.s32.totalorder %v1665, 148
        %vm1685 = vcmp.lt.s32.totalorder %v1666, 148
        %vm1686 = vcmp.lt.s32.totalorder %v1667, 148
        %vm1687 = vcmp.lt.s32.totalorder %v1668, 148
        %vm1688 = vcmp.lt.s32.totalorder %v1669, 148
        %vm1689 = vcmp.lt.s32.totalorder %v1670, 148
        %v1690 = vsel %vm1671, 1, 0
        %v1691 = vsel %vm1672, 1, 0
        %v1692 = vsel %vm1673, 1, 0
        %v1693 = vsel %vm1674, 1, 0
        %v1694 = vsel %vm1675, 1, 0
        %v1695 = vsel %vm1676, 1, 0
        %v1696 = vsel %vm1677, 1, 0
        %v1697 = vsel %vm1678, 1, 0
        %v1698 = vsel %vm1679, 1, 0
        %v1699 = vsel %vm1680, 1, 0
        %v1700 = vsel %vm1681, 1, 0
        %v1701 = vsel %vm1682, 1, 0
        %v1702 = vsel %vm1683, 1, 0
        %v1703 = vsel %vm1684, 1, 0
        %v1704 = vsel %vm1685, 1, 0
        %v1705 = vsel %vm1686, 1, 0
        %v1706 = vsel %vm1687, 1, 0
        %v1707 = vsel %vm1688, 1, 0
        %v1708 = vsel %vm1689, 1, 0
        %vm1709 = vcmp.eq.s32.totalorder %v1690, 1
        %vm1710 = vcmp.eq.s32.totalorder %v1691, 1
        %vm1711 = vcmp.eq.s32.totalorder %v1692, 1
        %vm1712 = vcmp.eq.s32.totalorder %v1693, 1
        %vm1713 = vcmp.eq.s32.totalorder %v1694, 1
        %vm1714 = vcmp.eq.s32.totalorder %v1695, 1
        %vm1715 = vcmp.eq.s32.totalorder %v1696, 1
        %vm1716 = vcmp.eq.s32.totalorder %v1697, 1
        %vm1717 = vcmp.eq.s32.totalorder %v1698, 1
        %vm1718 = vcmp.eq.s32.totalorder %v1699, 1
        %vm1719 = vcmp.eq.s32.totalorder %v1700, 1
        %vm1720 = vcmp.eq.s32.totalorder %v1701, 1
        %vm1721 = vcmp.eq.s32.totalorder %v1702, 1
        %vm1722 = vcmp.eq.s32.totalorder %v1703, 1
        %vm1723 = vcmp.eq.s32.totalorder %v1704, 1
        %vm1724 = vcmp.eq.s32.totalorder %v1705, 1
        %vm1725 = vcmp.eq.s32.totalorder %v1706, 1
        %vm1726 = vcmp.eq.s32.totalorder %v1707, 1
        %vm1727 = vcmp.eq.s32.totalorder %v1708, 1
        %v1728 = vsel %vm1709, %v1499, 0.0
        %v1729 = vsel %vm1710, %v1500, 0.0
        %v1730 = vsel %vm1711, %v1501, 0.0
        %v1731 = vsel %vm1712, %v1502, 0.0
        %v1732 = vsel %vm1713, %v1503, 0.0
        %v1733 = vsel %vm1714, %v1504, 0.0
        %v1734 = vsel %vm1715, %v1505, 0.0
        %v1735 = vsel %vm1716, %v1506, 0.0
        %v1736 = vsel %vm1717, %v1507, 0.0
        %v1737 = vsel %vm1718, %v1508, 0.0
        %v1738 = vsel %vm1719, %v1509, 0.0
        %v1739 = vsel %vm1720, %v1510, 0.0
        %v1740 = vsel %vm1721, %v1511, 0.0
        %v1741 = vsel %vm1722, %v1512, 0.0
        %v1742 = vsel %vm1723, %v1513, 0.0
        %v1743 = vsel %vm1724, %v1514, 0.0
        %v1744 = vsel %vm1725, %v1515, 0.0
        %v1745 = vsel %vm1726, %v1516, 0.0
        %v1746 = vsel %vm1727, %v1517, 0.0
        %1766 = vrot.lane.b32.xlu0 %v1728, 112
        %v1767 = vpop.permute.xlu0 %1766
        %1768 = vrot.lane.b32.xlu0 %v1729, 112
        %v1769 = vpop.permute.xlu0 %1768
        %1770 = vrot.lane.b32.xlu0 %v1730, 112
        %v1771 = vpop.permute.xlu0 %1770
        %1772 = vrot.lane.b32.xlu0 %v1731, 112
        %v1773 = vpop.permute.xlu0 %1772
        %1774 = vrot.lane.b32.xlu0 %v1732, 112
        %v1775 = vpop.permute.xlu0 %1774
        %1776 = vrot.lane.b32.xlu0 %v1733, 112
        %v1777 = vpop.permute.xlu0 %1776
        %1778 = vrot.lane.b32.xlu0 %v1734, 112
        %v1779 = vpop.permute.xlu0 %1778
        %1780 = vrot.lane.b32.xlu0 %v1735, 112
        %v1781 = vpop.permute.xlu0 %1780
        %1782 = vrot.lane.b32.xlu0 %v1736, 112
        %v1783 = vpop.permute.xlu0 %1782
        %1784 = vrot.lane.b32.xlu0 %v1737, 112
        %v1785 = vpop.permute.xlu0 %1784
        %1786 = vrot.lane.b32.xlu0 %v1738, 112
        %v1787 = vpop.permute.xlu0 %1786
        %1788 = vrot.lane.b32.xlu0 %v1739, 112
        %v1789 = vpop.permute.xlu0 %1788
        %1790 = vrot.lane.b32.xlu0 %v1740, 112
        %v1791 = vpop.permute.xlu0 %1790
        %1792 = vrot.lane.b32.xlu0 %v1741, 112
        %v1793 = vpop.permute.xlu0 %1792
        %1794 = vrot.lane.b32.xlu0 %v1742, 112
        %v1795 = vpop.permute.xlu0 %1794
        %1796 = vrot.lane.b32.xlu0 %v1743, 112
        %v1797 = vpop.permute.xlu0 %1796
        %1798 = vrot.lane.b32.xlu0 %v1744, 112
        %v1799 = vpop.permute.xlu0 %1798
        %1800 = vrot.lane.b32.xlu0 %v1745, 112
        %v1801 = vpop.permute.xlu0 %1800
        %1802 = vrot.lane.b32.xlu0 %v1746, 112
        %v1803 = vpop.permute.xlu0 %1802
        %v1823 = vsel %vm825, %v1767, 0.0
        %v1824 = vsel %vm825, %v1769, 0.0
        %v1825 = vadd.f32 %v1823, %v1824
        %v1826 = vsel %vm825, %v1771, 0.0
        %v1827 = vadd.f32 %v1825, %v1826
        %v1828 = vsel %vm825, %v1773, 0.0
        %v1829 = vadd.f32 %v1827, %v1828
        %v1830 = vsel %vm825, %v1775, 0.0
        %v1831 = vadd.f32 %v1829, %v1830
        %v1832 = vsel %vm825, %v1777, 0.0
        %v1833 = vadd.f32 %v1831, %v1832
        %v1834 = vsel %vm825, %v1779, 0.0
        %v1835 = vadd.f32 %v1833, %v1834
        %v1836 = vsel %vm825, %v1781, 0.0
        %v1837 = vadd.f32 %v1835, %v1836
        %v1838 = vsel %vm825, %v1783, 0.0
        %v1839 = vadd.f32 %v1837, %v1838
        %v1840 = vsel %vm825, %v1785, 0.0
        %v1841 = vadd.f32 %v1839, %v1840
        %v1842 = vsel %vm825, %v1787, 0.0
        %v1843 = vadd.f32 %v1841, %v1842
        %v1844 = vsel %vm825, %v1789, 0.0
        %v1845 = vadd.f32 %v1843, %v1844
        %v1846 = vsel %vm825, %v1791, 0.0
        %v1847 = vadd.f32 %v1845, %v1846
        %v1848 = vsel %vm825, %v1793, 0.0
        %v1849 = vadd.f32 %v1847, %v1848
        %v1850 = vsel %vm825, %v1795, 0.0
        %v1851 = vadd.f32 %v1849, %v1850
        %v1852 = vsel %vm825, %v1797, 0.0
        %v1853 = vadd.f32 %v1851, %v1852
        %v1854 = vsel %vm825, %v1799, 0.0
        %v1855 = vadd.f32 %v1853, %v1854
        %v1856 = vsel %vm825, %v1801, 0.0
        %v1857 = vadd.f32 %v1855, %v1856
        %v1858 = vsel %vm825, %v1803, 0.0
        %v1859 = vadd.f32 %v1857, %v1858
        %1860 = vadd.xlane.f32.xlu0 %v1859
        %v1861 = vpop.xlane.xlu0 %1860
        %v1862 = vrot.slane %v1861, 4
        %v1863 = vadd.f32 %v1861, %v1862
        %v1864 = vrot.slane %v1863, 2
        %v1865 = vadd.f32 %v1863, %v1864
        %v1866 = vrot.slane %v1865, 1
        %v1867 = vadd.f32 %v1865, %v1866
        %s1868 = vtos %v1867
        %v1869 = vstv %s1868
        %vm1870 = vcmask 0
        %1871 = vst.msk [vmem:[%s312] sm:$0x1] %vm1870, %v1869
      $region52: #{tpu_custom_call.1} parent=43 // pred_fallthru
        _
      %s1872 = smul.u32 19, %s19
      %p1873 = scmp.lt.s32.totalorder %s1872, 37
      %s1874 = scalar_select %p1873, %s1872, 37
      %s1875 = smul.addr %s1874, 8
      %s1876 = scalar_lea.vmem %s6, %s1875
      %p1877 = scmp.lt.s32.totalorder %s19, 1
      %s1878 = scalar_select %p1877, %s19, 1
      %s1879 = scalar_lea.vmem %s7, %s1878
      // Predicated region
      $region53: #{tpu_custom_call.1} parent=43 // pred_check
        %p1880 = pneg %p173
      $region54: #{tpu_custom_call.1} parent=43 // pred_check_branch
        %1882 = sbr.rel (%p1880) target = $region56
      $region55: #{tpu_custom_call.1} parent=43 // pred_region
        %s1883 = smul.u32 19, %s19
      $region56: #{tpu_custom_call.1} parent=43 // pred_fallthru
        _
      // Predicated region
      $region57: #{tpu_custom_call.1} parent=43 // pred_check
        %p1884 = pneg %p199
      $region58: #{tpu_custom_call.1} parent=43 // pred_check_branch
        %1886 = sbr.rel (%p1884) target = $region60
      $region59: #{tpu_custom_call.1} parent=43 // pred_region
        _
      $region60: #{tpu_custom_call.1} parent=43 // pred_fallthru
        _
    $region44: #{tpu_custom_call.1} parent=5 // pred_fallthru
      _
    %p1887 = scmp.le.s32.totalorder 2, %s14
    // Predicated region
    $region61: #{tpu_custom_call.1} parent=5 // pred_check
      %p1888 = pneg %p1887
    $region62: #{tpu_custom_call.1} parent=5 // pred_check_branch
      %1890 = sbr.rel (%p1888) target = $region64
    $region63: #{tpu_custom_call.1} parent=5 // pred_region
      %s1891 = ssub.s32 %s14, 2
      // Predicated region
      $region65: #{tpu_custom_call.1} parent=63 // pred_check
        %p1892 = pneg %p179
      $region66: #{tpu_custom_call.1} parent=63 // pred_check_branch
        %1894 = sbr.rel (%p1892) target = $region68
      $region67: #{tpu_custom_call.1} parent=63 // pred_region
        %s1895 = smul.u32 19, %s20
        %p1896 = scmp.lt.s32.totalorder %s1895, 37
        %s1897 = scalar_select %p1896, %s1895, 37
        %s1898 = smul.addr %s1897, 8
        %s1899 = scalar_lea.vmem %s6, %s1898
      $region68: #{tpu_custom_call.1} parent=63 // pred_fallthru
        _
      // Predicated region
      $region69: #{tpu_custom_call.1} parent=63 // pred_check
        %p1900 = pneg %p205
      $region70: #{tpu_custom_call.1} parent=63 // pred_check_branch
        %1902 = sbr.rel (%p1900) target = $region72
      $region71: #{tpu_custom_call.1} parent=63 // pred_region
        %p1903 = scmp.lt.s32.totalorder %s20, 1
        %s1904 = scalar_select %p1903, %s20, 1
        %s1905 = scalar_lea.vmem %s7, %s1904
      $region72: #{tpu_custom_call.1} parent=63 // pred_fallthru
        _
    $region64: #{tpu_custom_call.1} parent=5 // pred_fallthru
      _
  $region6: #{tpu_custom_call.1} parent=0 // loop_footer
    %s18 = sadd.s32 1, %s14
  $region7: #{tpu_custom_call.1} parent=0 // loop_footer_branch
    %13 = sbr.rel target = $region3
  $region8: #{tpu_custom_call.1} parent=0 // loop_exit
    _

</llo_original>
